<compile_context>
chip_gen: v7x
topology: tpu7x:2x2x1
jax: 0.10.0
libtpu: 0.0.40
codegen_flags: <defaults>
</compile_context>

<pallas_src>
import functools

import jax
import jax.numpy as jnp
from jax.experimental import pallas as pl
from jax.experimental.pallas import tpu as pltpu


def _softmax_lastdim(s, *, approx=True):
    """Numerically-stable softmax over the last axis.

    The reciprocal of the denominator goes to the EUP (approx=True) so it is
    essentially free alongside the VPU work.
    """
    m = jnp.max(s, axis=-1, keepdims=True)
    e = jnp.exp(s - m)
    return e * pl.reciprocal(jnp.sum(e, axis=-1, keepdims=True), approx=approx)


def ob_kernel(x_ref, xfit_ref, scal_ref, attn_ref, w1_ref, b1_ref,
              w2_ref, b2_ref, fcoef_ref, out_ref, *,
              mxu_dtype=jnp.float32, approx_softmax=True):
    # One grid step == one block of Bt batch elements.
    x = x_ref[...]                                            # (Bt, N, D) f32
    Bt, N, D = x.shape

    # --- per-batch fitness softmax over the population axis (lane reduce) ---
    fit = _softmax_lastdim(xfit_ref[...], approx=approx_softmax)   # (Bt, N)

    # --- fitness attention via the rank-1 affine identity + row invariance --
    # softmax_j((a*fi*fj + b*fi + c*fj + d) * D^-0.5)
    #   == softmax_j(fj * (a'*fi + c'))  with a' = a*D^-0.5, c' = c*D^-0.5.
    a2 = scal_ref[0]
    c2 = scal_ref[1]
    fw1 = scal_ref[2]                                         # softmax(F)[1]
    fi = fit[:, :, None]                                      # (Bt, N, 1)
    fj = fit[:, None, :]                                      # (Bt, 1, N)
    scores = fj * (a2 * fi + c2)                              # (Bt, N, N)
    fitattn = _softmax_lastdim(scores, approx=approx_softmax)

    # --- combined attention: attn_ref is already softmax(attn) * fw0 ---------
    combined = attn_ref[...][None, :, :] + fw1 * fitattn      # (Bt, N, N) f32
    if mxu_dtype != jnp.float32:
        combined_mm = combined.astype(mxu_dtype)
        x_mm = x.astype(mxu_dtype)
    else:
        combined_mm = combined
        x_mm = x
    cross = jnp.einsum('bij,bjd->bid', combined_mm, x_mm,
                       preferred_element_type=jnp.float32)    # (Bt, N, D) f32

    # --- mut MLP folded over the whole batch block: (Bt*N, D) @ (D, D) -------
    cross2 = cross.reshape(Bt * N, D)
    w1 = w1_ref[...]                                          # already mxu_dtype
    w2 = w2_ref[...]
    lhs1 = cross2.astype(mxu_dtype) if mxu_dtype != jnp.float32 else cross2
    h = jnp.dot(lhs1, w1, preferred_element_type=jnp.float32) + b1_ref[...]
    h = jnp.maximum(h, 0.0)
    lhs2 = h.astype(mxu_dtype) if mxu_dtype != jnp.float32 else h
    off2 = jnp.dot(lhs2, w2, preferred_element_type=jnp.float32) + b2_ref[...]
    offpop = off2.reshape(Bt, N, D)

    # --- epilogue: off = f1*x + f2*cross + f3*offpop (f* pre-broadcast to D) -
    fcoef = fcoef_ref[...]                                    # (3, N, D)
    out_ref[...] = (fcoef[0][None] * x
                    + fcoef[1][None] * cross
                    + fcoef[2][None] * offpop).astype(out_ref.dtype)


def _est_step_vmem_bytes(bt, N, D):
    """Generous estimate of per-grid-step VMEM working set (bytes)."""
    io = 4 * bt * N * D * 4                # x + out blocks, double-buffered
    nn_interm = 3 * bt * N * N * 4         # scores / fitattn / combined
    nd_interm = 5 * bt * N * D * 4         # cross / h / offpop / casts / slack
    consts = 2 * (2 * D * D * 4 + D * 4) + N * N * 4 + 3 * N * D * 4
    return io + nn_interm + nd_interm + consts


def _pick_block_b(B, N, D, *, target_rows=2048, vmem_budget=12 * 2**20):
    """Pick batch block Bt: legal for the 2-D xfit block (Bt == B or Bt % 8 == 0),
    Bt*N rows fill the MXU (up to target_rows) within a conservative VMEM
    budget.  Prefer an even number (>=2) of grid steps (v7x megacore + DMA
    overlap), then >=2 steps, then the largest legal block."""
    divisors = [t for t in range(1, B + 1) if B % t == 0]
    legal = [t for t in divisors if t == B or t % 8 == 0]
    fits = [t for t in legal
            if t * N <= target_rows and _est_step_vmem_bytes(t, N, D) <= vmem_budget]
    if not fits:
        fits = [min(legal)]
    even = [t for t in fits if (B // t) >= 2 and (B // t) % 2 == 0]
    multi = [t for t in fits if (B // t) >= 2]
    if even:
        return max(even)
    if multi:
        return max(multi)
    return max(fits)


def ob_forward(x, xfit, params, *, block_b=None, mxu_dtype=jnp.float32,
               approx_softmax=True):
    B, N, D = x.shape
    if block_b is None:
        block_b = _pick_block_b(B, N, D)
    assert B % block_b == 0

    # ----- batch-invariant precomputation, hoisted out of the grid loop -----
    attn_sm = jax.nn.softmax(params["attn"].astype(jnp.float32), axis=-1)   # (N, N)
    fw = jax.nn.softmax(params["F"].astype(jnp.float32), axis=-1)[0]        # (2,)
    attn_scaled = fw[0] * attn_sm                                           # fw0 folded in

    wq = params["wq"].astype(jnp.float32)
    bq = params["bq"].astype(jnp.float32)
    wk = params["wk"].astype(jnp.float32)
    bk = params["bk"].astype(jnp.float32)
    scale = jnp.float32(D) ** -0.5
    a2 = jnp.sum(wq * wk) * scale         # coefficient of fi*fj (post row-invariance)
    c2 = jnp.sum(bq * wk) * scale         # coefficient of fj
    scal = jnp.stack([a2, c2, fw[1]]).astype(jnp.float32)                   # (3,) -> SMEM

    # f1/f2/f3 pre-broadcast over D so the epilogue is plain FMAs.
    fcoef = jnp.broadcast_to(
        jnp.stack([params["f1"], params["f2"], params["f3"]], axis=0)
        .astype(jnp.float32).reshape(3, N, 1),
        (3, N, D))

    # Weights in MXU dtype from the wrapper (no per-step in-kernel cast, fewer
    # DMA bytes).  Biases / attention stay f32 (tiny, keeps f32 adds exact).
    w1 = params["w1"].astype(mxu_dtype)
    w2 = params["w2"].astype(mxu_dtype)
    b1 = params["b1"].astype(jnp.float32)
    b2 = params["b2"].astype(jnp.float32)

    est = _est_step_vmem_bytes(block_b, N, D)
    vmem_limit = int(min(max(4 * est, 32 * 2**20), 56 * 2**20))

    kernel = functools.partial(ob_kernel, mxu_dtype=mxu_dtype,
                               approx_softmax=approx_softmax)

    return pl.pallas_call(
        kernel,
        out_shape=jax.ShapeDtypeStruct((B, N, D), x.dtype),
        grid_spec=pltpu.PrefetchScalarGridSpec(
            num_scalar_prefetch=0,
            grid=(B // block_b,),
            in_specs=[
                pl.BlockSpec((block_b, N, D), lambda g: (g, 0, 0)),   # x
                pl.BlockSpec((block_b, N), lambda g: (g, 0)),         # xfit
                pl.BlockSpec(memory_space=pltpu.MemorySpace.SMEM),    # scalars
                pl.BlockSpec((N, N), lambda g: (0, 0)),               # fw0*softmax(attn)
                pl.BlockSpec((D, D), lambda g: (0, 0)),               # w1
                pl.BlockSpec((1, D), lambda g: (0, 0)),               # b1
                pl.BlockSpec((D, D), lambda g: (0, 0)),               # w2
                pl.BlockSpec((1, D), lambda g: (0, 0)),               # b2
                pl.BlockSpec((3, N, D), lambda g: (0, 0, 0)),         # f1/f2/f3 broadcast
            ],
            out_specs=pl.BlockSpec((block_b, N, D), lambda g: (g, 0, 0)),
        ),
        compiler_params=pltpu.CompilerParams(
            dimension_semantics=("parallel",),
            vmem_limit_bytes=vmem_limit),
    )(x, xfit, scal, attn_scaled, w1, b1, w2, b2, fcoef)


def init_params(key, pop_size, hidden_dim, dim):
    """Deterministic synthetic parameters matching the PyTorch module's shapes.
    Linear weights are stored transposed: y = x @ W + b."""
    ks = jax.random.split(key, 12)
    p = {
        "attn": jax.random.normal(ks[0], (pop_size, pop_size), jnp.float32),
        "wq":   jax.random.normal(ks[1], (1, hidden_dim), jnp.float32) * 0.5,
        "bq":   jax.random.normal(ks[2], (1, hidden_dim), jnp.float32) * 0.1,
        "wk":   jax.random.normal(ks[3], (1, hidden_dim), jnp.float32) * 0.5,
        "bk":   jax.random.normal(ks[4], (1, hidden_dim), jnp.float32) * 0.1,
        "F":    jax.random.normal(ks[5], (1, 2), jnp.float32),
        "w1":   jax.random.normal(ks[6], (dim, dim), jnp.float32) * (dim ** -0.5),
        "b1":   jax.random.normal(ks[7], (1, dim), jnp.float32) * 0.1,
        "w2":   jax.random.normal(ks[8], (dim, dim), jnp.float32) * (dim ** -0.5),
        "b2":   jax.random.normal(ks[9], (1, dim), jnp.float32) * 0.1,
        "f1":   jax.random.normal(ks[10], (pop_size, 1), jnp.float32),
        "f2":   jax.random.normal(ks[11], (pop_size, 1), jnp.float32),
    }
    p["f3"] = jax.random.normal(jax.random.fold_in(key, 99), (pop_size, 1), jnp.float32)
    return p


def ob_reference(x, xfit, p):
    """Pure-JAX reference of the PyTorch forward (explicit q/k path, exact
    softmax) for correctness checking of the algebraically-simplified kernel."""
    fitx = jax.nn.softmax(xfit, axis=-1)[..., None]                       # (B, N, 1)
    q = fitx @ p["wq"] + p["bq"]                                          # (B, N, H)
    k = fitx @ p["wk"] + p["bk"]
    scores = (q @ jnp.swapaxes(k, -1, -2)) * (x.shape[-1] ** -0.5)
    fitattn = jax.nn.softmax(scores, axis=-1)                             # (B, N, N)
    attn_sm = jax.nn.softmax(p["attn"], axis=-1)                          # (N, N)
    y1 = attn_sm[None] @ x
    y2 = fitattn @ x
    fw = jax.nn.softmax(p["F"], axis=-1)[0]
    cross = y1 * fw[0] + y2 * fw[1]
    h = jnp.maximum(cross @ p["w1"] + p["b1"], 0.0)
    offpop = h @ p["w2"] + p["b2"]
    return p["f1"][None] * x + p["f2"][None] * cross + p["f3"][None] * offpop


if __name__ == "__main__":
    # batch, popSize, dim, hidden_dim (small test sizes; block_b -> 8, grid -> 2)
    B, N, D, H = 16, 8, 32, 16

    key = jax.random.PRNGKey(0)
    kx, kf, kp = jax.random.split(key, 3)
    x = jax.random.normal(kx, (B, N, D), jnp.float32)
    xfit = jax.random.normal(kf, (B, N), jnp.float32)
    params = init_params(kp, N, H, D)

    # f32 MXU operands for the correctness check; pass mxu_dtype=jnp.bfloat16
    # (valid on v5e/v6e/v7x) for ~2x MXU throughput — loosen tolerance further
    # if you do.
    out = ob_forward(x, xfit, params)
    out = jax.block_until_ready(out)

    ref = ob_reference(x, xfit, params)
    assert out.shape == (B, N, D)
    err = jnp.max(jnp.abs(out - ref))
    # Tolerance covers the EUP approx-reciprocal (~2^-12 rel) softmax denominators.
    assert jnp.allclose(out, ref, atol=5e-3, rtol=5e-3), f"max err {err}"

    print("KERNEL_OK")
</pallas_src>

<mosaic_0001>
module attributes {stable_mosaic.version = 11 : i64} {
  func.func @ob_kernel(%arg0: i32, %arg1: memref<8x8x32xf32, #tpu.memory_space<vmem>>, %arg2: memref<8x8xf32, #tpu.memory_space<vmem>>, %arg3: memref<3xf32, #tpu.memory_space<smem>>, %arg4: memref<8x8xf32, #tpu.memory_space<vmem>>, %arg5: memref<32x32xf32, #tpu.memory_space<vmem>>, %arg6: memref<1x32xf32, #tpu.memory_space<vmem>>, %arg7: memref<32x32xf32, #tpu.memory_space<vmem>>, %arg8: memref<1x32xf32, #tpu.memory_space<vmem>>, %arg9: memref<3x8x32xf32, #tpu.memory_space<vmem>>, %arg10: memref<8x8x32xf32, #tpu.memory_space<vmem>>) attributes {dimension_semantics = [#tpu.dimension_semantics<parallel>], iteration_bounds = array<i64: 2>, scalar_prefetch = 0 : i64, scratch_operands = 0 : i64, tpu.core_type = #tpu.core_type<tc>, window_params = [{transform_indices = @transform_0, window_bounds = array<i64: 8, 8, 32>}, {transform_indices = @transform_1, window_bounds = array<i64: 8, 8>}, {transform_indices = @transform_2, window_bounds = array<i64: 3>}, {pipeline_mode = #tpu.pipeline_mode<synchronous>, transform_indices = @transform_3, window_bounds = array<i64: 8, 8>}, {pipeline_mode = #tpu.pipeline_mode<synchronous>, transform_indices = @transform_4, window_bounds = array<i64: 32, 32>}, {pipeline_mode = #tpu.pipeline_mode<synchronous>, transform_indices = @transform_5, window_bounds = array<i64: 1, 32>}, {pipeline_mode = #tpu.pipeline_mode<synchronous>, transform_indices = @transform_6, window_bounds = array<i64: 32, 32>}, {pipeline_mode = #tpu.pipeline_mode<synchronous>, transform_indices = @transform_7, window_bounds = array<i64: 1, 32>}, {pipeline_mode = #tpu.pipeline_mode<synchronous>, transform_indices = @transform_8, window_bounds = array<i64: 3, 8, 32>}, {transform_indices = @transform_9, window_bounds = array<i64: 8, 8, 32>}]} {
    %c0 = arith.constant 0 : index
    %c0_0 = arith.constant 0 : index
    %c0_1 = arith.constant 0 : index
    %0 = vector.load %arg1[%c0, %c0_0, %c0_1] : memref<8x8x32xf32, #tpu.memory_space<vmem>>, vector<8x8x32xf32>
    %c0_2 = arith.constant 0 : index
    %c0_3 = arith.constant 0 : index
    %1 = vector.load %arg2[%c0_2, %c0_3] : memref<8x8xf32, #tpu.memory_space<vmem>>, vector<8x8xf32>
    %cst = arith.constant dense<0xFF800000> : vector<8xf32>
    %2 = vector.multi_reduction <maximumf>, %1, %cst [1] : vector<8x8xf32> to vector<8xf32>
    %3 = vector.shape_cast %2 : vector<8xf32> to vector<8x1xf32>
    %4 = vector.broadcast %3 : vector<8x1xf32> to vector<8x8xf32>
    %5 = arith.subf %1, %4 : vector<8x8xf32>
    %6 = math.exp %5 : vector<8x8xf32>
    %cst_4 = arith.constant dense<0.000000e+00> : vector<8xf32>
    %7 = vector.multi_reduction <add>, %6, %cst_4 [1] : vector<8x8xf32> to vector<8xf32>
    %8 = vector.shape_cast %7 : vector<8xf32> to vector<8x1xf32>
    %9 = tpu.reciprocal %8 {approx = true} : vector<8x1xf32> -> vector<8x1xf32>
    %10 = vector.broadcast %9 : vector<8x1xf32> to vector<8x8xf32>
    %11 = arith.mulf %6, %10 : vector<8x8xf32>
    %c0_5 = arith.constant 0 : index
    %12 = memref.load %arg3[%c0_5] : memref<3xf32, #tpu.memory_space<smem>>
    %c1 = arith.constant 1 : index
    %13 = memref.load %arg3[%c1] : memref<3xf32, #tpu.memory_space<smem>>
    %c2 = arith.constant 2 : index
    %14 = memref.load %arg3[%c2] : memref<3xf32, #tpu.memory_space<smem>>
    %15 = vector.shape_cast %11 : vector<8x8xf32> to vector<8x8x1xf32>
    %16 = vector.shape_cast %11 : vector<8x8xf32> to vector<8x1x8xf32>
    %17 = vector.broadcast %12 : f32 to vector<8x8x1xf32>
    %18 = arith.mulf %17, %15 : vector<8x8x1xf32>
    %19 = vector.broadcast %13 : f32 to vector<8x8x1xf32>
    %20 = arith.addf %18, %19 : vector<8x8x1xf32>
    %21 = vector.broadcast %16 : vector<8x1x8xf32> to vector<8x8x8xf32>
    %22 = vector.broadcast %20 : vector<8x8x1xf32> to vector<8x8x8xf32>
    %23 = arith.mulf %21, %22 : vector<8x8x8xf32>
    %cst_6 = arith.constant dense<0xFF800000> : vector<8x8xf32>
    %24 = vector.multi_reduction <maximumf>, %23, %cst_6 [2] : vector<8x8x8xf32> to vector<8x8xf32>
    %25 = vector.shape_cast %24 : vector<8x8xf32> to vector<8x8x1xf32>
    %26 = vector.broadcast %25 : vector<8x8x1xf32> to vector<8x8x8xf32>
    %27 = arith.subf %23, %26 : vector<8x8x8xf32>
    %28 = math.exp %27 : vector<8x8x8xf32>
    %cst_7 = arith.constant dense<0.000000e+00> : vector<8x8xf32>
    %29 = vector.multi_reduction <add>, %28, %cst_7 [2] : vector<8x8x8xf32> to vector<8x8xf32>
    %30 = vector.shape_cast %29 : vector<8x8xf32> to vector<8x8x1xf32>
    %31 = tpu.reciprocal %30 {approx = true} : vector<8x8x1xf32> -> vector<8x8x1xf32>
    %32 = vector.broadcast %31 : vector<8x8x1xf32> to vector<8x8x8xf32>
    %33 = arith.mulf %28, %32 : vector<8x8x8xf32>
    %c0_8 = arith.constant 0 : index
    %c0_9 = arith.constant 0 : index
    %34 = vector.load %arg4[%c0_8, %c0_9] : memref<8x8xf32, #tpu.memory_space<vmem>>, vector<8x8xf32>
    %35 = vector.shape_cast %34 : vector<8x8xf32> to vector<1x8x8xf32>
    %36 = vector.broadcast %14 : f32 to vector<8x8x8xf32>
    %37 = arith.mulf %36, %33 : vector<8x8x8xf32>
    %38 = vector.broadcast %35 : vector<1x8x8xf32> to vector<8x8x8xf32>
    %39 = arith.addf %38, %37 : vector<8x8x8xf32>
    "tpu.trace_start"() <{level = 10 : i32, message = "bij,bjd->bid"}> : () -> ()
    %cst_10 = arith.constant dense<0.000000e+00> : vector<8x8x32xf32>
    %40 = tpu.matmul %39, %0, %cst_10 {dimension_numbers = #tpu.dot_dimension_numbers<[2], [1], [1], [2], [0, 0, 0, 1, 1, 2], [0], [0]>} : vector<8x8x8xf32>, vector<8x8x32xf32>, vector<8x8x32xf32> -> vector<8x8x32xf32>
    "tpu.trace_stop"() : () -> ()
    %41 = vector.shape_cast %40 : vector<8x8x32xf32> to vector<64x32xf32>
    %c0_11 = arith.constant 0 : index
    %c0_12 = arith.constant 0 : index
    %42 = vector.load %arg5[%c0_11, %c0_12] : memref<32x32xf32, #tpu.memory_space<vmem>>, vector<32x32xf32>
    %c0_13 = arith.constant 0 : index
    %c0_14 = arith.constant 0 : index
    %43 = vector.load %arg7[%c0_13, %c0_14] : memref<32x32xf32, #tpu.memory_space<vmem>>, vector<32x32xf32>
    %cst_15 = arith.constant dense<0.000000e+00> : vector<64x32xf32>
    %44 = tpu.matmul %41, %42, %cst_15 {dimension_numbers = #tpu.dot_dimension_numbers<[1], [0], [0], [1], [0, 0, 1, 1], [], []>} : vector<64x32xf32>, vector<32x32xf32>, vector<64x32xf32> -> vector<64x32xf32>
    %c0_16 = arith.constant 0 : index
    %c0_17 = arith.constant 0 : index
    %45 = vector.load %arg6[%c0_16, %c0_17] : memref<1x32xf32, #tpu.memory_space<vmem>>, vector<1x32xf32>
    %46 = vector.broadcast %45 : vector<1x32xf32> to vector<64x32xf32>
    %47 = arith.addf %44, %46 : vector<64x32xf32>
    %cst_18 = arith.constant 0.000000e+00 : f32
    %48 = vector.broadcast %cst_18 : f32 to vector<64x32xf32>
    %49 = arith.maximumf %47, %48 : vector<64x32xf32>
    %cst_19 = arith.constant dense<0.000000e+00> : vector<64x32xf32>
    %50 = tpu.matmul %49, %43, %cst_19 {dimension_numbers = #tpu.dot_dimension_numbers<[1], [0], [0], [1], [0, 0, 1, 1], [], []>} : vector<64x32xf32>, vector<32x32xf32>, vector<64x32xf32> -> vector<64x32xf32>
    %c0_20 = arith.constant 0 : index
    %c0_21 = arith.constant 0 : index
    %51 = vector.load %arg8[%c0_20, %c0_21] : memref<1x32xf32, #tpu.memory_space<vmem>>, vector<1x32xf32>
    %52 = vector.broadcast %51 : vector<1x32xf32> to vector<64x32xf32>
    %53 = arith.addf %50, %52 : vector<64x32xf32>
    %54 = vector.shape_cast %53 : vector<64x32xf32> to vector<8x8x32xf32>
    %c0_22 = arith.constant 0 : index
    %c0_23 = arith.constant 0 : index
    %c0_24 = arith.constant 0 : index
    %55 = vector.load %arg9[%c0_22, %c0_23, %c0_24] : memref<3x8x32xf32, #tpu.memory_space<vmem>>, vector<3x8x32xf32>
    %56 = vector.extract_strided_slice %55 {offsets = [0, 0, 0], sizes = [1, 8, 32], strides = [1, 1, 1]} : vector<3x8x32xf32> to vector<1x8x32xf32>
    %57 = vector.shape_cast %56 : vector<1x8x32xf32> to vector<8x32xf32>
    %58 = vector.shape_cast %57 : vector<8x32xf32> to vector<1x8x32xf32>
    %59 = vector.broadcast %58 : vector<1x8x32xf32> to vector<8x8x32xf32>
    %60 = arith.mulf %59, %0 : vector<8x8x32xf32>
    %61 = vector.extract_strided_slice %55 {offsets = [1, 0, 0], sizes = [1, 8, 32], strides = [1, 1, 1]} : vector<3x8x32xf32> to vector<1x8x32xf32>
    %62 = vector.shape_cast %61 : vector<1x8x32xf32> to vector<8x32xf32>
    %63 = vector.shape_cast %62 : vector<8x32xf32> to vector<1x8x32xf32>
    %64 = vector.broadcast %63 : vector<1x8x32xf32> to vector<8x8x32xf32>
    %65 = arith.mulf %64, %40 : vector<8x8x32xf32>
    %66 = arith.addf %60, %65 : vector<8x8x32xf32>
    %67 = vector.extract_strided_slice %55 {offsets = [2, 0, 0], sizes = [1, 8, 32], strides = [1, 1, 1]} : vector<3x8x32xf32> to vector<1x8x32xf32>
    %68 = vector.shape_cast %67 : vector<1x8x32xf32> to vector<8x32xf32>
    %69 = vector.shape_cast %68 : vector<8x32xf32> to vector<1x8x32xf32>
    %70 = vector.broadcast %69 : vector<1x8x32xf32> to vector<8x8x32xf32>
    %71 = arith.mulf %70, %54 : vector<8x8x32xf32>
    %72 = arith.addf %66, %71 : vector<8x8x32xf32>
    %c0_25 = arith.constant 0 : index
    %c0_26 = arith.constant 0 : index
    %c0_27 = arith.constant 0 : index
    %73 = vector.load %arg10[%c0_25, %c0_26, %c0_27] : memref<8x8x32xf32, #tpu.memory_space<vmem>>, vector<8x8x32xf32>
    tpu.vector_store %arg10[%c0_25, %c0_26, %c0_27], %72 {strides = array<i32>} : memref<8x8x32xf32, #tpu.memory_space<vmem>>, vector<8x8x32xf32>,
    return
  }
  func.func @transform_0(%arg0: i32) -> (i32, i32, i32) {
    %c0_i32 = arith.constant 0 : i32
    %c0_i32_0 = arith.constant 0 : i32
    %c0_i32_1 = arith.constant 0 : i32
    return %arg0, %c0_i32, %c0_i32_0 : i32, i32, i32
  }
  func.func @transform_1(%arg0: i32) -> (i32, i32) {
    %c0_i32 = arith.constant 0 : i32
    %c0_i32_0 = arith.constant 0 : i32
    return %arg0, %c0_i32 : i32, i32
  }
  func.func @transform_2(%arg0: i32) -> i32 {
    %c0_i32 = arith.constant 0 : i32
    %c0_i32_0 = arith.constant 0 : i32
    return %c0_i32 : i32
  }
  func.func @transform_3(%arg0: i32) -> (i32, i32) {
    %c0_i32 = arith.constant 0 : i32
    %c0_i32_0 = arith.constant 0 : i32
    %c0_i32_1 = arith.constant 0 : i32
    return %c0_i32, %c0_i32_0 : i32, i32
  }
  func.func @transform_4(%arg0: i32) -> (i32, i32) {
    %c0_i32 = arith.constant 0 : i32
    %c0_i32_0 = arith.constant 0 : i32
    %c0_i32_1 = arith.constant 0 : i32
    return %c0_i32, %c0_i32_0 : i32, i32
  }
  func.func @transform_5(%arg0: i32) -> (i32, i32) {
    %c0_i32 = arith.constant 0 : i32
    %c0_i32_0 = arith.constant 0 : i32
    %c0_i32_1 = arith.constant 0 : i32
    return %c0_i32, %c0_i32_0 : i32, i32
  }
  func.func @transform_6(%arg0: i32) -> (i32, i32) {
    %c0_i32 = arith.constant 0 : i32
    %c0_i32_0 = arith.constant 0 : i32
    %c0_i32_1 = arith.constant 0 : i32
    return %c0_i32, %c0_i32_0 : i32, i32
  }
  func.func @transform_7(%arg0: i32) -> (i32, i32) {
    %c0_i32 = arith.constant 0 : i32
    %c0_i32_0 = arith.constant 0 : i32
    %c0_i32_1 = arith.constant 0 : i32
    return %c0_i32, %c0_i32_0 : i32, i32
  }
  func.func @transform_8(%arg0: i32) -> (i32, i32, i32) {
    %c0_i32 = arith.constant 0 : i32
    %c0_i32_0 = arith.constant 0 : i32
    %c0_i32_1 = arith.constant 0 : i32
    %c0_i32_2 = arith.constant 0 : i32
    return %c0_i32, %c0_i32_0, %c0_i32_1 : i32, i32, i32
  }
  func.func @transform_9(%arg0: i32) -> (i32, i32, i32) {
    %c0_i32 = arith.constant 0 : i32
    %c0_i32_0 = arith.constant 0 : i32
    %c0_i32_1 = arith.constant 0 : i32
    return %arg0, %c0_i32, %c0_i32_0 : i32, i32, i32
  }
}

</mosaic_0001>

<llo_original>
// kernel: tpu_custom_call.1
$region0: #{tpu_custom_call.1}
  #allocation0 [shape = 'u32[]', space=smem, size = 0x4, offset = 0x4, fixed_abs, tag = 'smem constant byte address 0x4 - core index']
  #allocation1 [shape = 'u32[144,128]{1,0:T(1,128)}', space=vmem, size = 0x12000, scoped, tag = 'internal scratch']
  %s0 = inlined_call_operand.hbm [shape: f32[16,8,32], index: 0, kind: input, shape index: {}]
  %s1 = inlined_call_operand.vmem [shape: f32[16,8], index: 1, kind: input, shape index: {}]
  %s2 = inlined_call_operand.vmem [shape: f32[3], index: 2, kind: input, shape index: {}]
  %s3 = inlined_call_operand.hbm [shape: f32[8,8], index: 3, kind: input, shape index: {}]
  %s4 = inlined_call_operand.vmem [shape: f32[32,32], index: 4, kind: input, shape index: {}]
  %s5 = inlined_call_operand.vmem [shape: f32[1,32], index: 5, kind: input, shape index: {}]
  %s6 = inlined_call_operand.hbm [shape: f32[32,32], index: 6, kind: input, shape index: {}]
  %s7 = inlined_call_operand.vmem [shape: f32[1,32], index: 7, kind: input, shape index: {}]
  %s8 = inlined_call_operand.hbm [shape: f32[3,8,32], index: 8, kind: input, shape index: {}]
  %s9 = inlined_call_operand.hbm [shape: f32[16,8,32], index: 9, kind: output, shape index: {}]
  %s10 = sld [smem:[#allocation0]]
  $region89: #{tpu_custom_call.1} parent=0
    _
  %s12 = ssub.s32 1, %s10
  %s13 = scalar_select 0, %s12, %s10
  $region1: #{tpu_custom_call.1} parent=0
    #allocation2 [shape = 'u8[65536]{0}', space=vmem, size = 0x10000, scoped, tag = 'input window, operand 0']
    #allocation3 [shape = 's32[2]{0}', space=sflag, size = 0x8, scoped, tag = 'scoped memory for tpu_custom_call.1']
    #allocation4 [shape = 's32[2]{0}', space=sflag, size = 0x8, scoped, tag = 'scoped memory for tpu_custom_call.1']
    #allocation5 [shape = 's32[2]{0}', space=sflag, size = 0x8, scoped, tag = 'scoped memory for tpu_custom_call.1']
    #allocation6 [shape = 'u8[512]{0}', space=smem, size = 0x200, scoped, tag = 'input window, operand 2, single buffered']
    #allocation7 [shape = 'u8[4096]{0}', space=vmem, size = 0x1000, scoped, tag = 'input window, operand 3, single buffered']
    #allocation8 [shape = 's32[1]{0}', space=sflag, size = 0x4, scoped, tag = 'scoped memory for tpu_custom_call.1']
    #allocation9 [shape = 'u8[16384]{0}', space=vmem, size = 0x4000, scoped, tag = 'input window, operand 6, single buffered']
    #allocation10 [shape = 'u8[12288]{0}', space=vmem, size = 0x3000, scoped, tag = 'input window, operand 8, single buffered']
    #allocation11 [shape = 's32[1]{0}', space=sflag, size = 0x4, scoped, tag = 'scoped memory for tpu_custom_call.1']
    #allocation12 [shape = 'u8[65536]{0}', space=vmem, size = 0x10000, scoped, tag = 'output window, operand 0']
    %14 = vsyncpa [#allocation3], 0
    %s15 = scalar_lea.sflag [#allocation3], 1
    %16 = vsyncpa %s15, 0
    %17 = vsyncpa [#allocation5], 0
    %18 = vsyncpa [#allocation8], 0
    %19 = vsyncpa [#allocation11], 0
    %20 = vsyncpa [#allocation4], 0
    %s21 = scalar_lea.sflag [#allocation4], 1
    %22 = vsyncpa %s21, 0
    loop: start=0, step=1, limit=4
    $region2: #{tpu_custom_call.1} parent=1 // loop_pre_header
      _
    $region3: #{tpu_custom_call.1} parent=1 // loop_header
      %s24 = sphi 0, %s28
      %p25 = scmp.ge.s32.totalorder %s24, 4
      %s34 = sphi 0, %s36
      %s37 = sphi 0, %s34
      %s38 = sphi 0, %s37
      %s54 = sphi 0, %s38
      %s60 = sphi 0, %s62
      %s63 = sphi 0, %s60
      %s64 = sphi 0, %s63
      %s80 = sphi 0, %s64
      %s84 = sphi 0, %s84
      %s86 = sphi 0, %s84
      %s87 = sphi 0, %s86
      %s101 = sphi 0, %s87
      %s105 = sphi 0, %s105
      %s107 = sphi 0, %s105
      %s108 = sphi 0, %s107
      %s122 = sphi 0, %s108
      %s126 = sphi 0, %s126
      %s128 = sphi 0, %s126
      %s129 = sphi 0, %s128
      %s143 = sphi 0, %s129
      %s147 = sphi 0, %s147
      %s149 = sphi 0, %s147
      %s150 = sphi 0, %s149
      %s164 = sphi 0, %s150
      %s168 = sphi 0, %s168
      %s170 = sphi 0, %s168
      %s171 = sphi 0, %s170
      %s185 = sphi 0, %s171
      %s189 = sphi 0, %s189
      %s191 = sphi 0, %s189
      %s192 = sphi 0, %s191
      %s206 = sphi 0, %s192
      %s210 = sphi 0, %s210
      %s212 = sphi 0, %s210
      %s213 = sphi 0, %s212
      %s227 = sphi 0, %s213
      %s233 = sphi 0, %s235
      %s236 = sphi 0, %s233
      %s237 = sphi 0, %s236
      %s253 = sphi 0, %s237
    $region4: #{tpu_custom_call.1} parent=1 // loop_header_branch
      %27 = sbr.rel (%p25) target = $region8
    $region5: #{tpu_custom_call.1} parent=1 // loop_body
      %s29 = ssub.s32 %s24, 1
      %s30 = ssub.s32 %s24, 2
      %s31 = sadd.s32 %s24, 1
      %s32 = ssub.s32 %s24, %s31
      %p33 = scmp.eq.s32.totalorder %s32, 0
      %s35 = sadd.s32 %s34, 1
      %s36 = scalar_select %p33, %s34, %s35
      %p39 = pneg %p33
      %p40 = scmp.eq.s32.totalorder %s24, 1
      %p41 = por %p39, %p40
      %p42 = scmp.ne.s32.totalorder %s34, %s37
      %p43 = scmp.eq.s32.totalorder %s24, 0
      %p44 = por %p42, %p43
      %p45 = scmp.ne.s32.totalorder %s34, %s37
      %p46 = scmp.eq.s32.totalorder %s29, 1
      %p47 = por %p45, %p46
      %p48 = scmp.ne.s32.totalorder %s37, %s38
      %p49 = scmp.eq.s32.totalorder %s29, 0
      %p50 = por %p48, %p49
      %p51 = scmp.ne.s32.totalorder %s37, %s38
      %p52 = scmp.eq.s32.totalorder %s30, 1
      %p53 = por %p51, %p52
      %p55 = scmp.ne.s32.totalorder %s38, %s54
      %p56 = scmp.eq.s32.totalorder %s30, 0
      %p57 = por %p55, %p56
      %s58 = ssub.s32 %s24, %s31
      %p59 = scmp.eq.s32.totalorder %s58, 0
      %s61 = sadd.s32 %s60, 1
      %s62 = scalar_select %p59, %s60, %s61
      %p65 = pneg %p59
      %p66 = scmp.eq.s32.totalorder %s24, 1
      %p67 = por %p65, %p66
      %p68 = scmp.ne.s32.totalorder %s60, %s63
      %p69 = scmp.eq.s32.totalorder %s24, 0
      %p70 = por %p68, %p69
      %p71 = scmp.ne.s32.totalorder %s60, %s63
      %p72 = scmp.eq.s32.totalorder %s29, 1
      %p73 = por %p71, %p72
      %p74 = scmp.ne.s32.totalorder %s63, %s64
      %p75 = scmp.eq.s32.totalorder %s29, 0
      %p76 = por %p74, %p75
      %p77 = scmp.ne.s32.totalorder %s63, %s64
      %p78 = scmp.eq.s32.totalorder %s30, 1
      %p79 = por %p77, %p78
      %p81 = scmp.ne.s32.totalorder %s64, %s80
      %p82 = scmp.eq.s32.totalorder %s30, 0
      %p83 = por %p81, %p82
      %s85 = sadd.s32 %s84, 1
      %p88 = scmp.eq.s32.totalorder %s24, 1
      %p89 = scmp.ne.s32.totalorder %s84, %s86
      %p90 = scmp.eq.s32.totalorder %s24, 0
      %p91 = por %p89, %p90
      %p92 = scmp.ne.s32.totalorder %s84, %s86
      %p93 = scmp.eq.s32.totalorder %s29, 1
      %p94 = por %p92, %p93
      %p95 = scmp.ne.s32.totalorder %s86, %s87
      %p96 = scmp.eq.s32.totalorder %s29, 0
      %p97 = por %p95, %p96
      %p98 = scmp.ne.s32.totalorder %s86, %s87
      %p99 = scmp.eq.s32.totalorder %s30, 1
      %p100 = por %p98, %p99
      %p102 = scmp.ne.s32.totalorder %s87, %s101
      %p103 = scmp.eq.s32.totalorder %s30, 0
      %p104 = por %p102, %p103
      %s106 = sadd.s32 %s105, 1
      %p109 = scmp.eq.s32.totalorder %s24, 1
      %p110 = scmp.ne.s32.totalorder %s105, %s107
      %p111 = scmp.eq.s32.totalorder %s24, 0
      %p112 = por %p110, %p111
      %p113 = scmp.ne.s32.totalorder %s105, %s107
      %p114 = scmp.eq.s32.totalorder %s29, 1
      %p115 = por %p113, %p114
      %p116 = scmp.ne.s32.totalorder %s107, %s108
      %p117 = scmp.eq.s32.totalorder %s29, 0
      %p118 = por %p116, %p117
      %p119 = scmp.ne.s32.totalorder %s107, %s108
      %p120 = scmp.eq.s32.totalorder %s30, 1
      %p121 = por %p119, %p120
      %p123 = scmp.ne.s32.totalorder %s108, %s122
      %p124 = scmp.eq.s32.totalorder %s30, 0
      %p125 = por %p123, %p124
      %s127 = sadd.s32 %s126, 1
      %p130 = scmp.eq.s32.totalorder %s24, 1
      %p131 = scmp.ne.s32.totalorder %s126, %s128
      %p132 = scmp.eq.s32.totalorder %s24, 0
      %p133 = por %p131, %p132
      %p134 = scmp.ne.s32.totalorder %s126, %s128
      %p135 = scmp.eq.s32.totalorder %s29, 1
      %p136 = por %p134, %p135
      %p137 = scmp.ne.s32.totalorder %s128, %s129
      %p138 = scmp.eq.s32.totalorder %s29, 0
      %p139 = por %p137, %p138
      %p140 = scmp.ne.s32.totalorder %s128, %s129
      %p141 = scmp.eq.s32.totalorder %s30, 1
      %p142 = por %p140, %p141
      %p144 = scmp.ne.s32.totalorder %s129, %s143
      %p145 = scmp.eq.s32.totalorder %s30, 0
      %p146 = por %p144, %p145
      %s148 = sadd.s32 %s147, 1
      %p151 = scmp.eq.s32.totalorder %s24, 1
      %p152 = scmp.ne.s32.totalorder %s147, %s149
      %p153 = scmp.eq.s32.totalorder %s24, 0
      %p154 = por %p152, %p153
      %p155 = scmp.ne.s32.totalorder %s147, %s149
      %p156 = scmp.eq.s32.totalorder %s29, 1
      %p157 = por %p155, %p156
      %p158 = scmp.ne.s32.totalorder %s149, %s150
      %p159 = scmp.eq.s32.totalorder %s29, 0
      %p160 = por %p158, %p159
      %p161 = scmp.ne.s32.totalorder %s149, %s150
      %p162 = scmp.eq.s32.totalorder %s30, 1
      %p163 = por %p161, %p162
      %p165 = scmp.ne.s32.totalorder %s150, %s164
      %p166 = scmp.eq.s32.totalorder %s30, 0
      %p167 = por %p165, %p166
      %s169 = sadd.s32 %s168, 1
      %p172 = scmp.eq.s32.totalorder %s24, 1
      %p173 = scmp.ne.s32.totalorder %s168, %s170
      %p174 = scmp.eq.s32.totalorder %s24, 0
      %p175 = por %p173, %p174
      %p176 = scmp.ne.s32.totalorder %s168, %s170
      %p177 = scmp.eq.s32.totalorder %s29, 1
      %p178 = por %p176, %p177
      %p179 = scmp.ne.s32.totalorder %s170, %s171
      %p180 = scmp.eq.s32.totalorder %s29, 0
      %p181 = por %p179, %p180
      %p182 = scmp.ne.s32.totalorder %s170, %s171
      %p183 = scmp.eq.s32.totalorder %s30, 1
      %p184 = por %p182, %p183
      %p186 = scmp.ne.s32.totalorder %s171, %s185
      %p187 = scmp.eq.s32.totalorder %s30, 0
      %p188 = por %p186, %p187
      %s190 = sadd.s32 %s189, 1
      %p193 = scmp.eq.s32.totalorder %s24, 1
      %p194 = scmp.ne.s32.totalorder %s189, %s191
      %p195 = scmp.eq.s32.totalorder %s24, 0
      %p196 = por %p194, %p195
      %p197 = scmp.ne.s32.totalorder %s189, %s191
      %p198 = scmp.eq.s32.totalorder %s29, 1
      %p199 = por %p197, %p198
      %p200 = scmp.ne.s32.totalorder %s191, %s192
      %p201 = scmp.eq.s32.totalorder %s29, 0
      %p202 = por %p200, %p201
      %p203 = scmp.ne.s32.totalorder %s191, %s192
      %p204 = scmp.eq.s32.totalorder %s30, 1
      %p205 = por %p203, %p204
      %p207 = scmp.ne.s32.totalorder %s192, %s206
      %p208 = scmp.eq.s32.totalorder %s30, 0
      %p209 = por %p207, %p208
      %s211 = sadd.s32 %s210, 1
      %p214 = scmp.eq.s32.totalorder %s24, 1
      %p215 = scmp.ne.s32.totalorder %s210, %s212
      %p216 = scmp.eq.s32.totalorder %s24, 0
      %p217 = por %p215, %p216
      %p218 = scmp.ne.s32.totalorder %s210, %s212
      %p219 = scmp.eq.s32.totalorder %s29, 1
      %p220 = por %p218, %p219
      %p221 = scmp.ne.s32.totalorder %s212, %s213
      %p222 = scmp.eq.s32.totalorder %s29, 0
      %p223 = por %p221, %p222
      %p224 = scmp.ne.s32.totalorder %s212, %s213
      %p225 = scmp.eq.s32.totalorder %s30, 1
      %p226 = por %p224, %p225
      %p228 = scmp.ne.s32.totalorder %s213, %s227
      %p229 = scmp.eq.s32.totalorder %s30, 0
      %p230 = por %p228, %p229
      %s231 = ssub.s32 %s24, %s31
      %p232 = scmp.eq.s32.totalorder %s231, 0
      %s234 = sadd.s32 %s233, 1
      %s235 = scalar_select %p232, %s233, %s234
      %p238 = pneg %p232
      %p239 = scmp.eq.s32.totalorder %s24, 1
      %p240 = por %p238, %p239
      %p241 = scmp.ne.s32.totalorder %s233, %s236
      %p242 = scmp.eq.s32.totalorder %s24, 0
      %p243 = por %p241, %p242
      %p244 = scmp.ne.s32.totalorder %s233, %s236
      %p245 = scmp.eq.s32.totalorder %s29, 1
      %p246 = por %p244, %p245
      %p247 = scmp.ne.s32.totalorder %s236, %s237
      %p248 = scmp.eq.s32.totalorder %s29, 0
      %p249 = por %p247, %p248
      %p250 = scmp.ne.s32.totalorder %s236, %s237
      %p251 = scmp.eq.s32.totalorder %s30, 1
      %p252 = por %p250, %p251
      %p254 = scmp.ne.s32.totalorder %s237, %s253
      %p255 = scmp.eq.s32.totalorder %s30, 0
      %p256 = por %p254, %p255
      %p257 = scmp.le.s32.totalorder 1, %s24
      %p258 = scmp.lt.s32.totalorder %s24, 3
      %p259 = pnand %p257, %p258
      %p260 = pneg %p259
      // Predicated region
      $region9: #{tpu_custom_call.1} parent=5 // pred_check
        _
      $region10: #{tpu_custom_call.1} parent=5 // pred_check_branch
        %262 = sbr.rel (%p259) target = $region12
      $region11: #{tpu_custom_call.1} parent=5 // pred_region
        %s263 = ssub.s32 %s24, 1
        // Predicated region
        $region13: #{tpu_custom_call.1} parent=11 // pred_check
          %p264 = pneg %p97
        $region14: #{tpu_custom_call.1} parent=11 // pred_check_branch
          %266 = sbr.rel (%p264) target = $region16
        $region15: #{tpu_custom_call.1} parent=11 // pred_region
          %s268 = ssub.s32 16, 16
          %269 = vsyncadd [#allocation5], %s268
          %s271 = sshll.u32 %s2, 4
          %s272 = int_to_ptr.vmem [resolvable:$true] %s271
          %274 = dma.vmem_to_smem %s272, 16, [#allocation6], [#allocation5]
        $region16: #{tpu_custom_call.1} parent=11 // pred_fallthru
          _
        // Predicated region
        $region17: #{tpu_custom_call.1} parent=11 // pred_check
          %p275 = pneg %p118
        $region18: #{tpu_custom_call.1} parent=11 // pred_check_branch
          %277 = sbr.rel (%p275) target = $region20
        $region19: #{tpu_custom_call.1} parent=11 // pred_region
          %s279 = ssub.s32 128, 128
          %280 = vsyncadd [#allocation8], %s279
          %s282 = sshll.u32 [#allocation7], 4
          %s283 = int_to_ptr.vmem [resolvable:$true] %s282
          %285 = dma.hbm_to_vmem [thread:$0]  %s3, 128, %s283, [#allocation8]
        $region20: #{tpu_custom_call.1} parent=11 // pred_fallthru
          _
        // Predicated region
        $region21: #{tpu_custom_call.1} parent=11 // pred_check
          %p286 = pneg %p139
        $region22: #{tpu_custom_call.1} parent=11 // pred_check_branch
          %288 = sbr.rel (%p286) target = $region24
        $region23: #{tpu_custom_call.1} parent=11 // pred_region
          _
        $region24: #{tpu_custom_call.1} parent=11 // pred_fallthru
          _
        // Predicated region
        $region25: #{tpu_custom_call.1} parent=11 // pred_check
          %p289 = pneg %p160
        $region26: #{tpu_custom_call.1} parent=11 // pred_check_branch
          %291 = sbr.rel (%p289) target = $region28
        $region27: #{tpu_custom_call.1} parent=11 // pred_region
          _
        $region28: #{tpu_custom_call.1} parent=11 // pred_fallthru
          _
        // Predicated region
        $region29: #{tpu_custom_call.1} parent=11 // pred_check
          %p292 = pneg %p181
        $region30: #{tpu_custom_call.1} parent=11 // pred_check_branch
          %294 = sbr.rel (%p292) target = $region32
        $region31: #{tpu_custom_call.1} parent=11 // pred_region
          %s296 = ssub.s32 512, 512
          %297 = vsyncadd [#allocation8], %s296
          %s298 = sshll.u32 [#allocation9], 4
          %s299 = int_to_ptr.vmem [resolvable:$true] %s298
          %304 = dma.hbm_to_vmem [thread:$0]  %s6, 512, %s299, [#allocation8], 128, 128, 8
        $region32: #{tpu_custom_call.1} parent=11 // pred_fallthru
          _
        // Predicated region
        $region33: #{tpu_custom_call.1} parent=11 // pred_check
          %p305 = pneg %p202
        $region34: #{tpu_custom_call.1} parent=11 // pred_check_branch
          %307 = sbr.rel (%p305) target = $region36
        $region35: #{tpu_custom_call.1} parent=11 // pred_region
          _
        $region36: #{tpu_custom_call.1} parent=11 // pred_fallthru
          _
        // Predicated region
        $region37: #{tpu_custom_call.1} parent=11 // pred_check
          %p308 = pneg %p223
        $region38: #{tpu_custom_call.1} parent=11 // pred_check_branch
          %310 = sbr.rel (%p308) target = $region40
        $region39: #{tpu_custom_call.1} parent=11 // pred_region
          %s312 = ssub.s32 384, 384
          %313 = vsyncadd [#allocation11], %s312
          %s314 = sshll.u32 [#allocation10], 4
          %s315 = int_to_ptr.vmem [resolvable:$true] %s314
          %320 = dma.hbm_to_vmem [thread:$0]  %s8, 384, %s315, [#allocation11], 128, 128, 8
        $region40: #{tpu_custom_call.1} parent=11 // pred_fallthru
          _
      $region12: #{tpu_custom_call.1} parent=5 // pred_fallthru
        _
      %p321 = scmp.lt.s32.totalorder %s24, 2
      // Predicated region
      $region41: #{tpu_custom_call.1} parent=5 // pred_check
        %p322 = pneg %p321
      $region42: #{tpu_custom_call.1} parent=5 // pred_check_branch
        %324 = sbr.rel (%p322) target = $region44
      $region43: #{tpu_custom_call.1} parent=5 // pred_region
        // Predicated region
        $region45: #{tpu_custom_call.1} parent=43 // pred_check
          %p325 = pneg %p44
        $region46: #{tpu_custom_call.1} parent=43 // pred_check_branch
          %327 = sbr.rel (%p325) target = $region48
        $region47: #{tpu_custom_call.1} parent=43 // pred_region
          %s328 = sand.u32 %s34, 1
          %s329 = scalar_lea.sflag [#allocation3], %s328
          %s330 = sand.u32 %s34, 1
          %s331 = smul.addr %s330, 64
          %s332 = scalar_lea.vmem [#allocation2], %s331
          %s333 = smul.u32 8, %s24
          %s335 = ssub.s32 1024, 1024
          %336 = vsyncadd %s329, %s335
          %s337 = smul.addr %s333, 128
          %s338 = scalar_lea.hbm %s0, %s337
          %s339 = sshll.u32 %s332, 4
          %s340 = int_to_ptr.vmem [resolvable:$true] %s339
          %345 = dma.hbm_to_vmem [thread:$0]  %s338, 1024, %s340, %s329, 128, 128, 8
        $region48: #{tpu_custom_call.1} parent=43 // pred_fallthru
          _
        // Predicated region
        $region49: #{tpu_custom_call.1} parent=43 // pred_check
          %p346 = pneg %p70
        $region50: #{tpu_custom_call.1} parent=43 // pred_check_branch
          %348 = sbr.rel (%p346) target = $region52
        $region51: #{tpu_custom_call.1} parent=43 // pred_region
          %p349 = scmp.lt.s32.totalorder %s24, 1
          %s350 = scalar_select %p349, %s24, 1
          %s351 = smul.addr %s350, 8
          %s352 = scalar_lea.vmem %s1, %s351
        $region52: #{tpu_custom_call.1} parent=43 // pred_fallthru
          _
      $region44: #{tpu_custom_call.1} parent=5 // pred_fallthru
        _
      %p353 = scmp.le.s32.totalorder 1, %s24
      %p354 = scmp.lt.s32.totalorder %s24, 3
      %p355 = pnand %p353, %p354
      %p356 = pneg %p355
      // Predicated region
      $region53: #{tpu_custom_call.1} parent=5 // pred_check
        _
      $region54: #{tpu_custom_call.1} parent=5 // pred_check_branch
        %358 = sbr.rel (%p355) target = $region56
      $region55: #{tpu_custom_call.1} parent=5 // pred_region
        %s359 = ssub.s32 %s24, 1
        %s360 = sand.u32 %s37, 1
        %s361 = scalar_lea.sflag [#allocation3], %s360
        %s362 = sand.u32 %s37, 1
        %s363 = smul.addr %s362, 64
        %s364 = scalar_lea.vmem [#allocation2], %s363
        // Predicated region
        $region57: #{tpu_custom_call.1} parent=55 // pred_check
          %p365 = pneg %p50
        $region58: #{tpu_custom_call.1} parent=55 // pred_check_branch
          %367 = sbr.rel (%p365) target = $region60
        $region59: #{tpu_custom_call.1} parent=55 // pred_region
          %368 = dma.done %s361, 1024
        $region60: #{tpu_custom_call.1} parent=55 // pred_fallthru
          _
        // Predicated region
        $region61: #{tpu_custom_call.1} parent=55 // pred_check
          %p369 = pneg %p97
        $region62: #{tpu_custom_call.1} parent=55 // pred_check_branch
          %371 = sbr.rel (%p369) target = $region64
        $region63: #{tpu_custom_call.1} parent=55 // pred_region
          %372 = dma.done [#allocation5], 16
        $region64: #{tpu_custom_call.1} parent=55 // pred_fallthru
          _
        // Predicated region
        $region65: #{tpu_custom_call.1} parent=55 // pred_check
          %p373 = pneg %p118
        $region66: #{tpu_custom_call.1} parent=55 // pred_check_branch
          %375 = sbr.rel (%p373) target = $region68
        $region67: #{tpu_custom_call.1} parent=55 // pred_region
          %376 = dma.done [#allocation8], 128
        $region68: #{tpu_custom_call.1} parent=55 // pred_fallthru
          _
        // Predicated region
        $region69: #{tpu_custom_call.1} parent=55 // pred_check
          %p377 = pneg %p181
        $region70: #{tpu_custom_call.1} parent=55 // pred_check_branch
          %379 = sbr.rel (%p377) target = $region72
        $region71: #{tpu_custom_call.1} parent=55 // pred_region
          %380 = dma.done [#allocation8], 512
        $region72: #{tpu_custom_call.1} parent=55 // pred_fallthru
          _
        // Predicated region
        $region73: #{tpu_custom_call.1} parent=55 // pred_check
          %p381 = pneg %p223
        $region74: #{tpu_custom_call.1} parent=55 // pred_check_branch
          %383 = sbr.rel (%p381) target = $region76
        $region75: #{tpu_custom_call.1} parent=55 // pred_region
          %384 = dma.done [#allocation11], 384
        $region76: #{tpu_custom_call.1} parent=55 // pred_fallthru
          _
        %385 = sfence
        %s386 = sand.u32 %s37, 1
        %s387 = scalar_lea.sflag [#allocation3], %s386
        %s388 = sand.u32 %s37, 1
        %s389 = smul.addr %s388, 64
        %s390 = scalar_lea.vmem [#allocation2], %s389
        %p391 = pneg %p50
        %p392 = pneg %p47
        %p393 = scmp.lt.s32.totalorder %s29, 1
        %s394 = scalar_select %p393, %s29, 1
        %s395 = smul.addr %s394, 8
        %s396 = scalar_lea.vmem %s1, %s395
        %p397 = pneg %p76
        %p398 = pneg %p73
        %p399 = pneg %p97
        %p400 = pneg %p94
        %p401 = pneg %p118
        %p402 = pneg %p115
        %p403 = pneg %p139
        %p404 = pneg %p136
        %p405 = pneg %p160
        %p406 = pneg %p157
        %p407 = pneg %p181
        %p408 = pneg %p178
        %p409 = pneg %p202
        %p410 = pneg %p199
        %p411 = pneg %p223
        %p412 = pneg %p220
        %p413 = pneg %p249
        %p414 = pneg %p246
        %s415 = sand.u32 %s236, 1
        %s416 = scalar_lea.sflag [#allocation4], %s415
        %s417 = sand.u32 %s236, 1
        %s418 = smul.addr %s417, 64
        %s419 = scalar_lea.vmem [#allocation12], %s418
        %s420 = smul.u32 8, %s29
        %p421 = scmp.lt.s32.totalorder %s29, 1
        %s422 = scalar_select %p421, %s29, 1
        %s423 = smul.addr %s422, 8
        %s424 = scalar_lea.vmem %s1, %s423
        %s425 = smul.u32 8, %s29
        %v426 = vld [vmem:[%s364] sm:$0xff]
        %v427 = vld [vmem:[%s364 + $0x8] sm:$0xff]
        %v428 = vld [vmem:[%s364 + $0x10] sm:$0xff]
        %v429 = vld [vmem:[%s364 + $0x18] sm:$0xff]
        %v430 = vld [vmem:[%s364 + $0x20] sm:$0xff]
        %v431 = vld [vmem:[%s364 + $0x28] sm:$0xff]
        %v432 = vld [vmem:[%s364 + $0x30] sm:$0xff]
        %v433 = vld [vmem:[%s364 + $0x38] sm:$0xff]
        %v434 = vld [vmem:[%s424] sm:$0xff]
        %vm435 = vcmask 64512
        %v436 = vsel %vm435, %v434, -inf
        %437 = vmax.xlane.f32.xlu0 %v436
        %v438 = vpop.xlane.xlu0 %437
        %v439 = vsub.f32 %v434, %v438
        %v440 = vmul.f32 %v439, 1.442695
        %v441 = vpow.pop %v440
        %v442 = vsel %vm435, %v441, 0.0
        %443 = vadd.xlane.f32.xlu0 %v442
        %v444 = vpop.xlane.xlu0 %443
        %v445 = vrcp.pop %v444
        %v446 = vmul.f32 %v441, %v445
        %s447 = sld [smem:[#allocation6]]
        %s448 = sld [smem:[#allocation6 + $0x1]]
        %s449 = sld [smem:[#allocation6 + $0x2]]
        %v450 = vlaneseq
        %v451 = vshrl.u32 %v450, 7
        %v452 = vsub.s32 0, %v451
        %v453 = vrot.slane %v446, %v452
        %455 = vbcast.lane.b32.xlu0 %v453, 256
        %v456 = vpop.permute.xlu0 %455
        %v457 = vlaneseq
        %v458 = vshrl.u32 %v457, 7
        %v459 = vsub.s32 1, %v458
        %v460 = vrot.slane %v446, %v459
        %462 = vbcast.lane.b32.xlu0 %v460, 256
        %v463 = vpop.permute.xlu0 %462
        %v464 = vlaneseq
        %v465 = vshrl.u32 %v464, 7
        %v466 = vsub.s32 2, %v465
        %v467 = vrot.slane %v446, %v466
        %469 = vbcast.lane.b32.xlu0 %v467, 256
        %v470 = vpop.permute.xlu0 %469
        %v471 = vlaneseq
        %v472 = vshrl.u32 %v471, 7
        %v473 = vsub.s32 3, %v472
        %v474 = vrot.slane %v446, %v473
        %476 = vbcast.lane.b32.xlu0 %v474, 256
        %v477 = vpop.permute.xlu0 %476
        %v478 = vlaneseq
        %v479 = vshrl.u32 %v478, 7
        %v480 = vsub.s32 4, %v479
        %v481 = vrot.slane %v446, %v480
        %483 = vbcast.lane.b32.xlu0 %v481, 256
        %v484 = vpop.permute.xlu0 %483
        %v485 = vlaneseq
        %v486 = vshrl.u32 %v485, 7
        %v487 = vsub.s32 5, %v486
        %v488 = vrot.slane %v446, %v487
        %490 = vbcast.lane.b32.xlu0 %v488, 256
        %v491 = vpop.permute.xlu0 %490
        %v492 = vlaneseq
        %v493 = vshrl.u32 %v492, 7
        %v494 = vsub.s32 6, %v493
        %v495 = vrot.slane %v446, %v494
        %497 = vbcast.lane.b32.xlu0 %v495, 256
        %v498 = vpop.permute.xlu0 %497
        %v499 = vlaneseq
        %v500 = vshrl.u32 %v499, 7
        %v501 = vsub.s32 7, %v500
        %v502 = vrot.slane %v446, %v501
        %504 = vbcast.lane.b32.xlu0 %v502, 256
        %v505 = vpop.permute.xlu0 %504
        %v507 = vcombine.high %v446, %v446
        %v509 = vunpack.c.l.s4 1966171168
        %v510 = vunpack.c.0.s8 %v509
        %v511 = vlaneseq
        %v512 = vshrl.u32 %v511, 7
        %v513 = vsub.s32 %v510, %v512
        %v514 = vrot.slane %v446, %v513
        %v516 = vunpack.c.l.s4 1966171168
        %v517 = vunpack.c.0.s8 %v516
        %v518 = vlaneseq
        %v519 = vshrl.u32 %v518, 7
        %v520 = vsub.s32 %v517, %v519
        %v521 = vrot.slane %v507, %v520
        %v522 = vcombine.high %v514, %v514
        %v523 = vcombine.high %v521, %v521
        %v525 = vunpack.c.l.s4 1966171168
        %v526 = vunpack.c.0.s8 %v525
        %v527 = vlaneseq
        %v528 = vshrl.u32 %v527, 7
        %v529 = vsub.s32 %v526, %v528
        %v530 = vrot.slane %v514, %v529
        %v532 = vunpack.c.l.s4 1966171168
        %v533 = vunpack.c.0.s8 %v532
        %v534 = vlaneseq
        %v535 = vshrl.u32 %v534, 7
        %v536 = vsub.s32 %v533, %v535
        %v537 = vrot.slane %v521, %v536
        %v539 = vunpack.c.l.s4 1966171168
        %v540 = vunpack.c.0.s8 %v539
        %v541 = vlaneseq
        %v542 = vshrl.u32 %v541, 7
        %v543 = vsub.s32 %v540, %v542
        %v544 = vrot.slane %v522, %v543
        %v546 = vunpack.c.l.s4 1966171168
        %v547 = vunpack.c.0.s8 %v546
        %v548 = vlaneseq
        %v549 = vshrl.u32 %v548, 7
        %v550 = vsub.s32 %v547, %v549
        %v551 = vrot.slane %v523, %v550
        %v552 = vcombine.high %v530, %v530
        %v553 = vcombine.high %v537, %v537
        %v554 = vcombine.high %v544, %v544
        %v555 = vcombine.high %v551, %v551
        %v556 = vstv %s447
        %v557 = vmul.f32 %v556, %v456
        %v558 = vmul.f32 %v556, %v463
        %v559 = vmul.f32 %v556, %v470
        %v560 = vmul.f32 %v556, %v477
        %v561 = vmul.f32 %v556, %v484
        %v562 = vmul.f32 %v556, %v491
        %v563 = vmul.f32 %v556, %v498
        %v564 = vmul.f32 %v556, %v505
        %v565 = vstv %s448
        %v566 = vadd.f32 %v557, %v565
        %v567 = vadd.f32 %v558, %v565
        %v568 = vadd.f32 %v559, %v565
        %v569 = vadd.f32 %v560, %v565
        %v570 = vadd.f32 %v561, %v565
        %v571 = vadd.f32 %v562, %v565
        %v572 = vadd.f32 %v563, %v565
        %v573 = vadd.f32 %v564, %v565
        %v574 = vlaneseq
        %v575 = vshrl.u32 %v574, 7
        %v576 = vsub.s32 0, %v575
        %v577 = vrot.slane %v530, %v576
        %v578 = vlaneseq
        %v579 = vshrl.u32 %v578, 7
        %v580 = vsub.s32 0, %v579
        %v581 = vrot.slane %v544, %v580
        %v582 = vlaneseq
        %v583 = vshrl.u32 %v582, 7
        %v584 = vsub.s32 0, %v583
        %v585 = vrot.slane %v552, %v584
        %v586 = vlaneseq
        %v587 = vshrl.u32 %v586, 7
        %v588 = vsub.s32 0, %v587
        %v589 = vrot.slane %v554, %v588
        %v590 = vlaneseq
        %v591 = vshrl.u32 %v590, 7
        %v592 = vsub.s32 0, %v591
        %v593 = vrot.slane %v537, %v592
        %v594 = vlaneseq
        %v595 = vshrl.u32 %v594, 7
        %v596 = vsub.s32 0, %v595
        %v597 = vrot.slane %v551, %v596
        %v598 = vlaneseq
        %v599 = vshrl.u32 %v598, 7
        %v600 = vsub.s32 0, %v599
        %v601 = vrot.slane %v553, %v600
        %v602 = vlaneseq
        %v603 = vshrl.u32 %v602, 7
        %v604 = vsub.s32 0, %v603
        %v605 = vrot.slane %v555, %v604
        %v614 = vmul.f32 %v577, %v566
        %v615 = vmul.f32 %v581, %v567
        %v616 = vmul.f32 %v585, %v568
        %v617 = vmul.f32 %v589, %v569
        %v618 = vmul.f32 %v593, %v570
        %v619 = vmul.f32 %v597, %v571
        %v620 = vmul.f32 %v601, %v572
        %v621 = vmul.f32 %v605, %v573
        %v622 = vsel %vm435, %v614, -inf
        %623 = vmax.xlane.f32.xlu0 %v622
        %v624 = vpop.xlane.xlu0 %623
        %v625 = vsel %vm435, %v615, -inf
        %626 = vmax.xlane.f32.xlu0 %v625
        %v627 = vpop.xlane.xlu0 %626
        %v628 = vsel %vm435, %v616, -inf
        %629 = vmax.xlane.f32.xlu0 %v628
        %v630 = vpop.xlane.xlu0 %629
        %v631 = vsel %vm435, %v617, -inf
        %632 = vmax.xlane.f32.xlu0 %v631
        %v633 = vpop.xlane.xlu0 %632
        %v634 = vsel %vm435, %v618, -inf
        %635 = vmax.xlane.f32.xlu0 %v634
        %v636 = vpop.xlane.xlu0 %635
        %v637 = vsel %vm435, %v619, -inf
        %638 = vmax.xlane.f32.xlu0 %v637
        %v639 = vpop.xlane.xlu0 %638
        %v640 = vsel %vm435, %v620, -inf
        %641 = vmax.xlane.f32.xlu0 %v640
        %v642 = vpop.xlane.xlu0 %641
        %v643 = vsel %vm435, %v621, -inf
        %644 = vmax.xlane.f32.xlu0 %v643
        %v645 = vpop.xlane.xlu0 %644
        %v646 = vsub.f32 %v614, %v624
        %v647 = vsub.f32 %v615, %v627
        %v648 = vsub.f32 %v616, %v630
        %v649 = vsub.f32 %v617, %v633
        %v650 = vsub.f32 %v618, %v636
        %v651 = vsub.f32 %v619, %v639
        %v652 = vsub.f32 %v620, %v642
        %v653 = vsub.f32 %v621, %v645
        %v654 = vmul.f32 %v646, 1.442695
        %v655 = vpow.pop %v654
        %v656 = vmul.f32 %v647, 1.442695
        %v657 = vpow.pop %v656
        %v658 = vmul.f32 %v648, 1.442695
        %v659 = vpow.pop %v658
        %v660 = vmul.f32 %v649, 1.442695
        %v661 = vpow.pop %v660
        %v662 = vmul.f32 %v650, 1.442695
        %v663 = vpow.pop %v662
        %v664 = vmul.f32 %v651, 1.442695
        %v665 = vpow.pop %v664
        %v666 = vmul.f32 %v652, 1.442695
        %v667 = vpow.pop %v666
        %v668 = vmul.f32 %v653, 1.442695
        %v669 = vpow.pop %v668
        %v670 = vsel %vm435, %v655, 0.0
        %671 = vadd.xlane.f32.xlu0 %v670
        %v672 = vpop.xlane.xlu0 %671
        %v673 = vsel %vm435, %v657, 0.0
        %674 = vadd.xlane.f32.xlu0 %v673
        %v675 = vpop.xlane.xlu0 %674
        %v676 = vsel %vm435, %v659, 0.0
        %677 = vadd.xlane.f32.xlu0 %v676
        %v678 = vpop.xlane.xlu0 %677
        %v679 = vsel %vm435, %v661, 0.0
        %680 = vadd.xlane.f32.xlu0 %v679
        %v681 = vpop.xlane.xlu0 %680
        %v682 = vsel %vm435, %v663, 0.0
        %683 = vadd.xlane.f32.xlu0 %v682
        %v684 = vpop.xlane.xlu0 %683
        %v685 = vsel %vm435, %v665, 0.0
        %686 = vadd.xlane.f32.xlu0 %v685
        %v687 = vpop.xlane.xlu0 %686
        %v688 = vsel %vm435, %v667, 0.0
        %689 = vadd.xlane.f32.xlu0 %v688
        %v690 = vpop.xlane.xlu0 %689
        %v691 = vsel %vm435, %v669, 0.0
        %692 = vadd.xlane.f32.xlu0 %v691
        %v693 = vpop.xlane.xlu0 %692
        %v694 = vrcp.pop %v672
        %v695 = vrcp.pop %v675
        %v696 = vrcp.pop %v678
        %v697 = vrcp.pop %v681
        %v698 = vrcp.pop %v684
        %v699 = vrcp.pop %v687
        %v700 = vrcp.pop %v690
        %v701 = vrcp.pop %v693
        %v702 = vmul.f32 %v655, %v694
        %v703 = vmul.f32 %v657, %v695
        %v704 = vmul.f32 %v659, %v696
        %v705 = vmul.f32 %v661, %v697
        %v706 = vmul.f32 %v663, %v698
        %v707 = vmul.f32 %v665, %v699
        %v708 = vmul.f32 %v667, %v700
        %v709 = vmul.f32 %v669, %v701
        %v710 = vld [vmem:[#allocation7] sm:$0xff]
        %v711 = vstv %s449
        %v712 = vmul.f32 %v711, %v702
        %v713 = vmul.f32 %v711, %v703
        %v714 = vmul.f32 %v711, %v704
        %v715 = vmul.f32 %v711, %v705
        %v716 = vmul.f32 %v711, %v706
        %v717 = vmul.f32 %v711, %v707
        %v718 = vmul.f32 %v711, %v708
        %v719 = vmul.f32 %v711, %v709
        %v720 = vadd.f32 %v710, %v712
        %v721 = vadd.f32 %v710, %v713
        %v722 = vadd.f32 %v710, %v714
        %v723 = vadd.f32 %v710, %v715
        %v724 = vadd.f32 %v710, %v716
        %v725 = vadd.f32 %v710, %v717
        %v726 = vadd.f32 %v710, %v718
        %v727 = vadd.f32 %v710, %v719
        %v729 = vsel %vm435, %v720, 0
        %731 = vmatprep.subr.mxu0 0.0
        %732 = vmatpush1.msra.mxu0 %v426
        %733 = vmatprep.subr.mxu0 0.0
        %734 = vmatpush1.msra.mxu0 0.0
        %735 = vmatprep.subr.mxu0 0.0
        %736 = vmatpush1.msra.mxu0 0.0
        %737 = vmatprep.subr.mxu0 0.0
        %738 = vmatpush1.msra.mxu0 0.0
        %739 = vmatprep.subr.mxu0 0.0
        %740 = vmatpush1.msra.mxu0 0.0
        %741 = vmatprep.subr.mxu0 0.0
        %742 = vmatpush1.msra.mxu0 0.0
        %743 = vmatprep.subr.mxu0 0.0
        %744 = vmatpush1.msra.mxu0 0.0
        %745 = vmatprep.subr.mxu0 0.0
        %746 = vmatpush1.msra.mxu0 0.0
        %747 = vmatprep.subr.mxu0 0.0
        %748 = vmatpush1.msra.mxu0 0.0
        %749 = vmatprep.subr.mxu0 0.0
        %750 = vmatpush1.msra.mxu0 0.0
        %751 = vmatprep.subr.mxu0 0.0
        %752 = vmatpush1.msra.mxu0 0.0
        %753 = vmatprep.subr.mxu0 0.0
        %754 = vmatpush1.msra.mxu0 0.0
        %755 = vmatprep.subr.mxu0 0.0
        %756 = vmatpush1.msra.mxu0 0.0
        %757 = vmatprep.subr.mxu0 0.0
        %758 = vmatpush1.msra.mxu0 0.0
        %759 = vmatprep.subr.mxu0 0.0
        %760 = vmatpush1.msra.mxu0 0.0
        %761 = vmatprep.subr.mxu0 0.0
        %762 = vmatpush1.msra.mxu0 0.0
        %763 = vmatprep.subr.mxu0 0.0
        %764 = vmatpush1.msra.mxu0 0.0
        %765 = vmatprep.subr.mxu0 0.0
        %766 = vmatpush1.msra.mxu0 0.0
        %767 = vmatprep.subr.mxu0 0.0
        %768 = vmatpush1.msra.mxu0 0.0
        %769 = vmatprep.subr.mxu0 0.0
        %770 = vmatpush1.msra.mxu0 0.0
        %771 = vmatprep.subr.mxu0 0.0
        %772 = vmatpush1.msra.mxu0 0.0
        %773 = vmatprep.subr.mxu0 0.0
        %774 = vmatpush1.msra.mxu0 0.0
        %775 = vmatprep.subr.mxu0 0.0
        %776 = vmatpush1.msra.mxu0 0.0
        %777 = vmatprep.subr.mxu0 0.0
        %778 = vmatpush1.msra.mxu0 0.0
        %779 = vmatprep.subr.mxu0 0.0
        %780 = vmatpush1.msra.mxu0 0.0
        %781 = vmatprep.subr.mxu0 0.0
        %782 = vmatpush1.msra.mxu0 0.0
        %783 = vmatprep.subr.mxu0 0.0
        %784 = vmatpush1.msra.mxu0 0.0
        %785 = vmatprep.subr.mxu0 0.0
        %786 = vmatpush1.msra.mxu0 0.0
        %787 = vmatprep.subr.mxu0 0.0
        %788 = vmatpush1.msra.mxu0 0.0
        %789 = vmatprep.subr.mxu0 0.0
        %790 = vmatpush1.msra.mxu0 0.0
        %791 = vmatprep.subr.mxu0 0.0
        %792 = vmatpush1.msra.mxu0 0.0
        %793 = vmatprep.subr.mxu0 0.0
        %794 = vmatpush1.msra.mxu0 0.0
        %795 = vmatprep.mubr.f32.mxu0 0.0
        %796 = vmatmul.mubr.f32.gmra.mrb[0].mxu0 %v729
        %v797 = vpop.f32.mrb[0].mxu0
        %v798 = vadd.f32 0.0, %v797
        %v799 = vpop.f32.mrb[0].mxu0
        %800 = vdwg.mxu0
        %v802 = vsel %vm435, %v721, 0
        %804 = vmatprep.subr.mxu0 0.0
        %805 = vmatpush1.msra.mxu0 %v427
        %806 = vmatprep.subr.mxu0 0.0
        %807 = vmatpush1.msra.mxu0 0.0
        %808 = vmatprep.subr.mxu0 0.0
        %809 = vmatpush1.msra.mxu0 0.0
        %810 = vmatprep.subr.mxu0 0.0
        %811 = vmatpush1.msra.mxu0 0.0
        %812 = vmatprep.subr.mxu0 0.0
        %813 = vmatpush1.msra.mxu0 0.0
        %814 = vmatprep.subr.mxu0 0.0
        %815 = vmatpush1.msra.mxu0 0.0
        %816 = vmatprep.subr.mxu0 0.0
        %817 = vmatpush1.msra.mxu0 0.0
        %818 = vmatprep.subr.mxu0 0.0
        %819 = vmatpush1.msra.mxu0 0.0
        %820 = vmatprep.subr.mxu0 0.0
        %821 = vmatpush1.msra.mxu0 0.0
        %822 = vmatprep.subr.mxu0 0.0
        %823 = vmatpush1.msra.mxu0 0.0
        %824 = vmatprep.subr.mxu0 0.0
        %825 = vmatpush1.msra.mxu0 0.0
        %826 = vmatprep.subr.mxu0 0.0
        %827 = vmatpush1.msra.mxu0 0.0
        %828 = vmatprep.subr.mxu0 0.0
        %829 = vmatpush1.msra.mxu0 0.0
        %830 = vmatprep.subr.mxu0 0.0
        %831 = vmatpush1.msra.mxu0 0.0
        %832 = vmatprep.subr.mxu0 0.0
        %833 = vmatpush1.msra.mxu0 0.0
        %834 = vmatprep.subr.mxu0 0.0
        %835 = vmatpush1.msra.mxu0 0.0
        %836 = vmatprep.subr.mxu0 0.0
        %837 = vmatpush1.msra.mxu0 0.0
        %838 = vmatprep.subr.mxu0 0.0
        %839 = vmatpush1.msra.mxu0 0.0
        %840 = vmatprep.subr.mxu0 0.0
        %841 = vmatpush1.msra.mxu0 0.0
        %842 = vmatprep.subr.mxu0 0.0
        %843 = vmatpush1.msra.mxu0 0.0
        %844 = vmatprep.subr.mxu0 0.0
        %845 = vmatpush1.msra.mxu0 0.0
        %846 = vmatprep.subr.mxu0 0.0
        %847 = vmatpush1.msra.mxu0 0.0
        %848 = vmatprep.subr.mxu0 0.0
        %849 = vmatpush1.msra.mxu0 0.0
        %850 = vmatprep.subr.mxu0 0.0
        %851 = vmatpush1.msra.mxu0 0.0
        %852 = vmatprep.subr.mxu0 0.0
        %853 = vmatpush1.msra.mxu0 0.0
        %854 = vmatprep.subr.mxu0 0.0
        %855 = vmatpush1.msra.mxu0 0.0
        %856 = vmatprep.subr.mxu0 0.0
        %857 = vmatpush1.msra.mxu0 0.0
        %858 = vmatprep.subr.mxu0 0.0
        %859 = vmatpush1.msra.mxu0 0.0
        %860 = vmatprep.subr.mxu0 0.0
        %861 = vmatpush1.msra.mxu0 0.0
        %862 = vmatprep.subr.mxu0 0.0
        %863 = vmatpush1.msra.mxu0 0.0
        %864 = vmatprep.subr.mxu0 0.0
        %865 = vmatpush1.msra.mxu0 0.0
        %866 = vmatprep.subr.mxu0 0.0
        %867 = vmatpush1.msra.mxu0 0.0
        %868 = vmatprep.mubr.f32.mxu0 0.0
        %869 = vmatmul.mubr.f32.gmra.mrb[0].mxu0 %v802
        %v870 = vpop.f32.mrb[0].mxu0
        %v871 = vadd.f32 0.0, %v870
        %v872 = vpop.f32.mrb[0].mxu0
        %873 = vdwg.mxu0
        %v875 = vsel %vm435, %v722, 0
        %877 = vmatprep.subr.mxu0 0.0
        %878 = vmatpush1.msra.mxu0 %v428
        %879 = vmatprep.subr.mxu0 0.0
        %880 = vmatpush1.msra.mxu0 0.0
        %881 = vmatprep.subr.mxu0 0.0
        %882 = vmatpush1.msra.mxu0 0.0
        %883 = vmatprep.subr.mxu0 0.0
        %884 = vmatpush1.msra.mxu0 0.0
        %885 = vmatprep.subr.mxu0 0.0
        %886 = vmatpush1.msra.mxu0 0.0
        %887 = vmatprep.subr.mxu0 0.0
        %888 = vmatpush1.msra.mxu0 0.0
        %889 = vmatprep.subr.mxu0 0.0
        %890 = vmatpush1.msra.mxu0 0.0
        %891 = vmatprep.subr.mxu0 0.0
        %892 = vmatpush1.msra.mxu0 0.0
        %893 = vmatprep.subr.mxu0 0.0
        %894 = vmatpush1.msra.mxu0 0.0
        %895 = vmatprep.subr.mxu0 0.0
        %896 = vmatpush1.msra.mxu0 0.0
        %897 = vmatprep.subr.mxu0 0.0
        %898 = vmatpush1.msra.mxu0 0.0
        %899 = vmatprep.subr.mxu0 0.0
        %900 = vmatpush1.msra.mxu0 0.0
        %901 = vmatprep.subr.mxu0 0.0
        %902 = vmatpush1.msra.mxu0 0.0
        %903 = vmatprep.subr.mxu0 0.0
        %904 = vmatpush1.msra.mxu0 0.0
        %905 = vmatprep.subr.mxu0 0.0
        %906 = vmatpush1.msra.mxu0 0.0
        %907 = vmatprep.subr.mxu0 0.0
        %908 = vmatpush1.msra.mxu0 0.0
        %909 = vmatprep.subr.mxu0 0.0
        %910 = vmatpush1.msra.mxu0 0.0
        %911 = vmatprep.subr.mxu0 0.0
        %912 = vmatpush1.msra.mxu0 0.0
        %913 = vmatprep.subr.mxu0 0.0
        %914 = vmatpush1.msra.mxu0 0.0
        %915 = vmatprep.subr.mxu0 0.0
        %916 = vmatpush1.msra.mxu0 0.0
        %917 = vmatprep.subr.mxu0 0.0
        %918 = vmatpush1.msra.mxu0 0.0
        %919 = vmatprep.subr.mxu0 0.0
        %920 = vmatpush1.msra.mxu0 0.0
        %921 = vmatprep.subr.mxu0 0.0
        %922 = vmatpush1.msra.mxu0 0.0
        %923 = vmatprep.subr.mxu0 0.0
        %924 = vmatpush1.msra.mxu0 0.0
        %925 = vmatprep.subr.mxu0 0.0
        %926 = vmatpush1.msra.mxu0 0.0
        %927 = vmatprep.subr.mxu0 0.0
        %928 = vmatpush1.msra.mxu0 0.0
        %929 = vmatprep.subr.mxu0 0.0
        %930 = vmatpush1.msra.mxu0 0.0
        %931 = vmatprep.subr.mxu0 0.0
        %932 = vmatpush1.msra.mxu0 0.0
        %933 = vmatprep.subr.mxu0 0.0
        %934 = vmatpush1.msra.mxu0 0.0
        %935 = vmatprep.subr.mxu0 0.0
        %936 = vmatpush1.msra.mxu0 0.0
        %937 = vmatprep.subr.mxu0 0.0
        %938 = vmatpush1.msra.mxu0 0.0
        %939 = vmatprep.subr.mxu0 0.0
        %940 = vmatpush1.msra.mxu0 0.0
        %941 = vmatprep.mubr.f32.mxu0 0.0
        %942 = vmatmul.mubr.f32.gmra.mrb[0].mxu0 %v875
        %v943 = vpop.f32.mrb[0].mxu0
        %v944 = vadd.f32 0.0, %v943
        %v945 = vpop.f32.mrb[0].mxu0
        %946 = vdwg.mxu0
        %v948 = vsel %vm435, %v723, 0
        %950 = vmatprep.subr.mxu0 0.0
        %951 = vmatpush1.msra.mxu0 %v429
        %952 = vmatprep.subr.mxu0 0.0
        %953 = vmatpush1.msra.mxu0 0.0
        %954 = vmatprep.subr.mxu0 0.0
        %955 = vmatpush1.msra.mxu0 0.0
        %956 = vmatprep.subr.mxu0 0.0
        %957 = vmatpush1.msra.mxu0 0.0
        %958 = vmatprep.subr.mxu0 0.0
        %959 = vmatpush1.msra.mxu0 0.0
        %960 = vmatprep.subr.mxu0 0.0
        %961 = vmatpush1.msra.mxu0 0.0
        %962 = vmatprep.subr.mxu0 0.0
        %963 = vmatpush1.msra.mxu0 0.0
        %964 = vmatprep.subr.mxu0 0.0
        %965 = vmatpush1.msra.mxu0 0.0
        %966 = vmatprep.subr.mxu0 0.0
        %967 = vmatpush1.msra.mxu0 0.0
        %968 = vmatprep.subr.mxu0 0.0
        %969 = vmatpush1.msra.mxu0 0.0
        %970 = vmatprep.subr.mxu0 0.0
        %971 = vmatpush1.msra.mxu0 0.0
        %972 = vmatprep.subr.mxu0 0.0
        %973 = vmatpush1.msra.mxu0 0.0
        %974 = vmatprep.subr.mxu0 0.0
        %975 = vmatpush1.msra.mxu0 0.0
        %976 = vmatprep.subr.mxu0 0.0
        %977 = vmatpush1.msra.mxu0 0.0
        %978 = vmatprep.subr.mxu0 0.0
        %979 = vmatpush1.msra.mxu0 0.0
        %980 = vmatprep.subr.mxu0 0.0
        %981 = vmatpush1.msra.mxu0 0.0
        %982 = vmatprep.subr.mxu0 0.0
        %983 = vmatpush1.msra.mxu0 0.0
        %984 = vmatprep.subr.mxu0 0.0
        %985 = vmatpush1.msra.mxu0 0.0
        %986 = vmatprep.subr.mxu0 0.0
        %987 = vmatpush1.msra.mxu0 0.0
        %988 = vmatprep.subr.mxu0 0.0
        %989 = vmatpush1.msra.mxu0 0.0
        %990 = vmatprep.subr.mxu0 0.0
        %991 = vmatpush1.msra.mxu0 0.0
        %992 = vmatprep.subr.mxu0 0.0
        %993 = vmatpush1.msra.mxu0 0.0
        %994 = vmatprep.subr.mxu0 0.0
        %995 = vmatpush1.msra.mxu0 0.0
        %996 = vmatprep.subr.mxu0 0.0
        %997 = vmatpush1.msra.mxu0 0.0
        %998 = vmatprep.subr.mxu0 0.0
        %999 = vmatpush1.msra.mxu0 0.0
        %1000 = vmatprep.subr.mxu0 0.0
        %1001 = vmatpush1.msra.mxu0 0.0
        %1002 = vmatprep.subr.mxu0 0.0
        %1003 = vmatpush1.msra.mxu0 0.0
        %1004 = vmatprep.subr.mxu0 0.0
        %1005 = vmatpush1.msra.mxu0 0.0
        %1006 = vmatprep.subr.mxu0 0.0
        %1007 = vmatpush1.msra.mxu0 0.0
        %1008 = vmatprep.subr.mxu0 0.0
        %1009 = vmatpush1.msra.mxu0 0.0
        %1010 = vmatprep.subr.mxu0 0.0
        %1011 = vmatpush1.msra.mxu0 0.0
        %1012 = vmatprep.subr.mxu0 0.0
        %1013 = vmatpush1.msra.mxu0 0.0
        %1014 = vmatprep.mubr.f32.mxu0 0.0
        %1015 = vmatmul.mubr.f32.gmra.mrb[0].mxu0 %v948
        %v1016 = vpop.f32.mrb[0].mxu0
        %v1017 = vadd.f32 0.0, %v1016
        %v1018 = vpop.f32.mrb[0].mxu0
        %1019 = vdwg.mxu0
        %v1021 = vsel %vm435, %v724, 0
        %1023 = vmatprep.subr.mxu0 0.0
        %1024 = vmatpush1.msra.mxu0 %v430
        %1025 = vmatprep.subr.mxu0 0.0
        %1026 = vmatpush1.msra.mxu0 0.0
        %1027 = vmatprep.subr.mxu0 0.0
        %1028 = vmatpush1.msra.mxu0 0.0
        %1029 = vmatprep.subr.mxu0 0.0
        %1030 = vmatpush1.msra.mxu0 0.0
        %1031 = vmatprep.subr.mxu0 0.0
        %1032 = vmatpush1.msra.mxu0 0.0
        %1033 = vmatprep.subr.mxu0 0.0
        %1034 = vmatpush1.msra.mxu0 0.0
        %1035 = vmatprep.subr.mxu0 0.0
        %1036 = vmatpush1.msra.mxu0 0.0
        %1037 = vmatprep.subr.mxu0 0.0
        %1038 = vmatpush1.msra.mxu0 0.0
        %1039 = vmatprep.subr.mxu0 0.0
        %1040 = vmatpush1.msra.mxu0 0.0
        %1041 = vmatprep.subr.mxu0 0.0
        %1042 = vmatpush1.msra.mxu0 0.0
        %1043 = vmatprep.subr.mxu0 0.0
        %1044 = vmatpush1.msra.mxu0 0.0
        %1045 = vmatprep.subr.mxu0 0.0
        %1046 = vmatpush1.msra.mxu0 0.0
        %1047 = vmatprep.subr.mxu0 0.0
        %1048 = vmatpush1.msra.mxu0 0.0
        %1049 = vmatprep.subr.mxu0 0.0
        %1050 = vmatpush1.msra.mxu0 0.0
        %1051 = vmatprep.subr.mxu0 0.0
        %1052 = vmatpush1.msra.mxu0 0.0
        %1053 = vmatprep.subr.mxu0 0.0
        %1054 = vmatpush1.msra.mxu0 0.0
        %1055 = vmatprep.subr.mxu0 0.0
        %1056 = vmatpush1.msra.mxu0 0.0
        %1057 = vmatprep.subr.mxu0 0.0
        %1058 = vmatpush1.msra.mxu0 0.0
        %1059 = vmatprep.subr.mxu0 0.0
        %1060 = vmatpush1.msra.mxu0 0.0
        %1061 = vmatprep.subr.mxu0 0.0
        %1062 = vmatpush1.msra.mxu0 0.0
        %1063 = vmatprep.subr.mxu0 0.0
        %1064 = vmatpush1.msra.mxu0 0.0
        %1065 = vmatprep.subr.mxu0 0.0
        %1066 = vmatpush1.msra.mxu0 0.0
        %1067 = vmatprep.subr.mxu0 0.0
        %1068 = vmatpush1.msra.mxu0 0.0
        %1069 = vmatprep.subr.mxu0 0.0
        %1070 = vmatpush1.msra.mxu0 0.0
        %1071 = vmatprep.subr.mxu0 0.0
        %1072 = vmatpush1.msra.mxu0 0.0
        %1073 = vmatprep.subr.mxu0 0.0
        %1074 = vmatpush1.msra.mxu0 0.0
        %1075 = vmatprep.subr.mxu0 0.0
        %1076 = vmatpush1.msra.mxu0 0.0
        %1077 = vmatprep.subr.mxu0 0.0
        %1078 = vmatpush1.msra.mxu0 0.0
        %1079 = vmatprep.subr.mxu0 0.0
        %1080 = vmatpush1.msra.mxu0 0.0
        %1081 = vmatprep.subr.mxu0 0.0
        %1082 = vmatpush1.msra.mxu0 0.0
        %1083 = vmatprep.subr.mxu0 0.0
        %1084 = vmatpush1.msra.mxu0 0.0
        %1085 = vmatprep.subr.mxu0 0.0
        %1086 = vmatpush1.msra.mxu0 0.0
        %1087 = vmatprep.mubr.f32.mxu0 0.0
        %1088 = vmatmul.mubr.f32.gmra.mrb[0].mxu0 %v1021
        %v1089 = vpop.f32.mrb[0].mxu0
        %v1090 = vadd.f32 0.0, %v1089
        %v1091 = vpop.f32.mrb[0].mxu0
        %1092 = vdwg.mxu0
        %v1094 = vsel %vm435, %v725, 0
        %1096 = vmatprep.subr.mxu0 0.0
        %1097 = vmatpush1.msra.mxu0 %v431
        %1098 = vmatprep.subr.mxu0 0.0
        %1099 = vmatpush1.msra.mxu0 0.0
        %1100 = vmatprep.subr.mxu0 0.0
        %1101 = vmatpush1.msra.mxu0 0.0
        %1102 = vmatprep.subr.mxu0 0.0
        %1103 = vmatpush1.msra.mxu0 0.0
        %1104 = vmatprep.subr.mxu0 0.0
        %1105 = vmatpush1.msra.mxu0 0.0
        %1106 = vmatprep.subr.mxu0 0.0
        %1107 = vmatpush1.msra.mxu0 0.0
        %1108 = vmatprep.subr.mxu0 0.0
        %1109 = vmatpush1.msra.mxu0 0.0
        %1110 = vmatprep.subr.mxu0 0.0
        %1111 = vmatpush1.msra.mxu0 0.0
        %1112 = vmatprep.subr.mxu0 0.0
        %1113 = vmatpush1.msra.mxu0 0.0
        %1114 = vmatprep.subr.mxu0 0.0
        %1115 = vmatpush1.msra.mxu0 0.0
        %1116 = vmatprep.subr.mxu0 0.0
        %1117 = vmatpush1.msra.mxu0 0.0
        %1118 = vmatprep.subr.mxu0 0.0
        %1119 = vmatpush1.msra.mxu0 0.0
        %1120 = vmatprep.subr.mxu0 0.0
        %1121 = vmatpush1.msra.mxu0 0.0
        %1122 = vmatprep.subr.mxu0 0.0
        %1123 = vmatpush1.msra.mxu0 0.0
        %1124 = vmatprep.subr.mxu0 0.0
        %1125 = vmatpush1.msra.mxu0 0.0
        %1126 = vmatprep.subr.mxu0 0.0
        %1127 = vmatpush1.msra.mxu0 0.0
        %1128 = vmatprep.subr.mxu0 0.0
        %1129 = vmatpush1.msra.mxu0 0.0
        %1130 = vmatprep.subr.mxu0 0.0
        %1131 = vmatpush1.msra.mxu0 0.0
        %1132 = vmatprep.subr.mxu0 0.0
        %1133 = vmatpush1.msra.mxu0 0.0
        %1134 = vmatprep.subr.mxu0 0.0
        %1135 = vmatpush1.msra.mxu0 0.0
        %1136 = vmatprep.subr.mxu0 0.0
        %1137 = vmatpush1.msra.mxu0 0.0
        %1138 = vmatprep.subr.mxu0 0.0
        %1139 = vmatpush1.msra.mxu0 0.0
        %1140 = vmatprep.subr.mxu0 0.0
        %1141 = vmatpush1.msra.mxu0 0.0
        %1142 = vmatprep.subr.mxu0 0.0
        %1143 = vmatpush1.msra.mxu0 0.0
        %1144 = vmatprep.subr.mxu0 0.0
        %1145 = vmatpush1.msra.mxu0 0.0
        %1146 = vmatprep.subr.mxu0 0.0
        %1147 = vmatpush1.msra.mxu0 0.0
        %1148 = vmatprep.subr.mxu0 0.0
        %1149 = vmatpush1.msra.mxu0 0.0
        %1150 = vmatprep.subr.mxu0 0.0
        %1151 = vmatpush1.msra.mxu0 0.0
        %1152 = vmatprep.subr.mxu0 0.0
        %1153 = vmatpush1.msra.mxu0 0.0
        %1154 = vmatprep.subr.mxu0 0.0
        %1155 = vmatpush1.msra.mxu0 0.0
        %1156 = vmatprep.subr.mxu0 0.0
        %1157 = vmatpush1.msra.mxu0 0.0
        %1158 = vmatprep.subr.mxu0 0.0
        %1159 = vmatpush1.msra.mxu0 0.0
        %1160 = vmatprep.mubr.f32.mxu0 0.0
        %1161 = vmatmul.mubr.f32.gmra.mrb[0].mxu0 %v1094
        %v1162 = vpop.f32.mrb[0].mxu0
        %v1163 = vadd.f32 0.0, %v1162
        %v1164 = vpop.f32.mrb[0].mxu0
        %1165 = vdwg.mxu0
        %v1167 = vsel %vm435, %v726, 0
        %1169 = vmatprep.subr.mxu0 0.0
        %1170 = vmatpush1.msra.mxu0 %v432
        %1171 = vmatprep.subr.mxu0 0.0
        %1172 = vmatpush1.msra.mxu0 0.0
        %1173 = vmatprep.subr.mxu0 0.0
        %1174 = vmatpush1.msra.mxu0 0.0
        %1175 = vmatprep.subr.mxu0 0.0
        %1176 = vmatpush1.msra.mxu0 0.0
        %1177 = vmatprep.subr.mxu0 0.0
        %1178 = vmatpush1.msra.mxu0 0.0
        %1179 = vmatprep.subr.mxu0 0.0
        %1180 = vmatpush1.msra.mxu0 0.0
        %1181 = vmatprep.subr.mxu0 0.0
        %1182 = vmatpush1.msra.mxu0 0.0
        %1183 = vmatprep.subr.mxu0 0.0
        %1184 = vmatpush1.msra.mxu0 0.0
        %1185 = vmatprep.subr.mxu0 0.0
        %1186 = vmatpush1.msra.mxu0 0.0
        %1187 = vmatprep.subr.mxu0 0.0
        %1188 = vmatpush1.msra.mxu0 0.0
        %1189 = vmatprep.subr.mxu0 0.0
        %1190 = vmatpush1.msra.mxu0 0.0
        %1191 = vmatprep.subr.mxu0 0.0
        %1192 = vmatpush1.msra.mxu0 0.0
        %1193 = vmatprep.subr.mxu0 0.0
        %1194 = vmatpush1.msra.mxu0 0.0
        %1195 = vmatprep.subr.mxu0 0.0
        %1196 = vmatpush1.msra.mxu0 0.0
        %1197 = vmatprep.subr.mxu0 0.0
        %1198 = vmatpush1.msra.mxu0 0.0
        %1199 = vmatprep.subr.mxu0 0.0
        %1200 = vmatpush1.msra.mxu0 0.0
        %1201 = vmatprep.subr.mxu0 0.0
        %1202 = vmatpush1.msra.mxu0 0.0
        %1203 = vmatprep.subr.mxu0 0.0
        %1204 = vmatpush1.msra.mxu0 0.0
        %1205 = vmatprep.subr.mxu0 0.0
        %1206 = vmatpush1.msra.mxu0 0.0
        %1207 = vmatprep.subr.mxu0 0.0
        %1208 = vmatpush1.msra.mxu0 0.0
        %1209 = vmatprep.subr.mxu0 0.0
        %1210 = vmatpush1.msra.mxu0 0.0
        %1211 = vmatprep.subr.mxu0 0.0
        %1212 = vmatpush1.msra.mxu0 0.0
        %1213 = vmatprep.subr.mxu0 0.0
        %1214 = vmatpush1.msra.mxu0 0.0
        %1215 = vmatprep.subr.mxu0 0.0
        %1216 = vmatpush1.msra.mxu0 0.0
        %1217 = vmatprep.subr.mxu0 0.0
        %1218 = vmatpush1.msra.mxu0 0.0
        %1219 = vmatprep.subr.mxu0 0.0
        %1220 = vmatpush1.msra.mxu0 0.0
        %1221 = vmatprep.subr.mxu0 0.0
        %1222 = vmatpush1.msra.mxu0 0.0
        %1223 = vmatprep.subr.mxu0 0.0
        %1224 = vmatpush1.msra.mxu0 0.0
        %1225 = vmatprep.subr.mxu0 0.0
        %1226 = vmatpush1.msra.mxu0 0.0
        %1227 = vmatprep.subr.mxu0 0.0
        %1228 = vmatpush1.msra.mxu0 0.0
        %1229 = vmatprep.subr.mxu0 0.0
        %1230 = vmatpush1.msra.mxu0 0.0
        %1231 = vmatprep.subr.mxu0 0.0
        %1232 = vmatpush1.msra.mxu0 0.0
        %1233 = vmatprep.mubr.f32.mxu0 0.0
        %1234 = vmatmul.mubr.f32.gmra.mrb[0].mxu0 %v1167
        %v1235 = vpop.f32.mrb[0].mxu0
        %v1236 = vadd.f32 0.0, %v1235
        %v1237 = vpop.f32.mrb[0].mxu0
        %1238 = vdwg.mxu0
        %v1240 = vsel %vm435, %v727, 0
        %1242 = vmatprep.subr.mxu0 0.0
        %1243 = vmatpush1.msra.mxu0 %v433
        %1244 = vmatprep.subr.mxu0 0.0
        %1245 = vmatpush1.msra.mxu0 0.0
        %1246 = vmatprep.subr.mxu0 0.0
        %1247 = vmatpush1.msra.mxu0 0.0
        %1248 = vmatprep.subr.mxu0 0.0
        %1249 = vmatpush1.msra.mxu0 0.0
        %1250 = vmatprep.subr.mxu0 0.0
        %1251 = vmatpush1.msra.mxu0 0.0
        %1252 = vmatprep.subr.mxu0 0.0
        %1253 = vmatpush1.msra.mxu0 0.0
        %1254 = vmatprep.subr.mxu0 0.0
        %1255 = vmatpush1.msra.mxu0 0.0
        %1256 = vmatprep.subr.mxu0 0.0
        %1257 = vmatpush1.msra.mxu0 0.0
        %1258 = vmatprep.subr.mxu0 0.0
        %1259 = vmatpush1.msra.mxu0 0.0
        %1260 = vmatprep.subr.mxu0 0.0
        %1261 = vmatpush1.msra.mxu0 0.0
        %1262 = vmatprep.subr.mxu0 0.0
        %1263 = vmatpush1.msra.mxu0 0.0
        %1264 = vmatprep.subr.mxu0 0.0
        %1265 = vmatpush1.msra.mxu0 0.0
        %1266 = vmatprep.subr.mxu0 0.0
        %1267 = vmatpush1.msra.mxu0 0.0
        %1268 = vmatprep.subr.mxu0 0.0
        %1269 = vmatpush1.msra.mxu0 0.0
        %1270 = vmatprep.subr.mxu0 0.0
        %1271 = vmatpush1.msra.mxu0 0.0
        %1272 = vmatprep.subr.mxu0 0.0
        %1273 = vmatpush1.msra.mxu0 0.0
        %1274 = vmatprep.subr.mxu0 0.0
        %1275 = vmatpush1.msra.mxu0 0.0
        %1276 = vmatprep.subr.mxu0 0.0
        %1277 = vmatpush1.msra.mxu0 0.0
        %1278 = vmatprep.subr.mxu0 0.0
        %1279 = vmatpush1.msra.mxu0 0.0
        %1280 = vmatprep.subr.mxu0 0.0
        %1281 = vmatpush1.msra.mxu0 0.0
        %1282 = vmatprep.subr.mxu0 0.0
        %1283 = vmatpush1.msra.mxu0 0.0
        %1284 = vmatprep.subr.mxu0 0.0
        %1285 = vmatpush1.msra.mxu0 0.0
        %1286 = vmatprep.subr.mxu0 0.0
        %1287 = vmatpush1.msra.mxu0 0.0
        %1288 = vmatprep.subr.mxu0 0.0
        %1289 = vmatpush1.msra.mxu0 0.0
        %1290 = vmatprep.subr.mxu0 0.0
        %1291 = vmatpush1.msra.mxu0 0.0
        %1292 = vmatprep.subr.mxu0 0.0
        %1293 = vmatpush1.msra.mxu0 0.0
        %1294 = vmatprep.subr.mxu0 0.0
        %1295 = vmatpush1.msra.mxu0 0.0
        %1296 = vmatprep.subr.mxu0 0.0
        %1297 = vmatpush1.msra.mxu0 0.0
        %1298 = vmatprep.subr.mxu0 0.0
        %1299 = vmatpush1.msra.mxu0 0.0
        %1300 = vmatprep.subr.mxu0 0.0
        %1301 = vmatpush1.msra.mxu0 0.0
        %1302 = vmatprep.subr.mxu0 0.0
        %1303 = vmatpush1.msra.mxu0 0.0
        %1304 = vmatprep.subr.mxu0 0.0
        %1305 = vmatpush1.msra.mxu0 0.0
        %1306 = vmatprep.mubr.f32.mxu0 0.0
        %1307 = vmatmul.mubr.f32.gmra.mrb[0].mxu0 %v1240
        %v1308 = vpop.f32.mrb[0].mxu0
        %v1309 = vadd.f32 0.0, %v1308
        %v1310 = vpop.f32.mrb[0].mxu0
        %1311 = vdwg.mxu0
        %v1312 = vld [vmem:[%s4] sm:$0xff]
        %v1313 = vld [vmem:[%s4 + $0x8] sm:$0xff]
        %v1314 = vld [vmem:[%s4 + $0x10] sm:$0xff]
        %v1315 = vld [vmem:[%s4 + $0x18] sm:$0xff]
        %v1316 = vld [vmem:[#allocation9] sm:$0xff]
        %v1317 = vld [vmem:[#allocation9 + $0x8] sm:$0xff]
        %v1318 = vld [vmem:[#allocation9 + $0x10] sm:$0xff]
        %v1319 = vld [vmem:[#allocation9 + $0x18] sm:$0xff]
        %v1320 = vld [vmem:[%s5] sm:$0x1]
        %v1322 = vlaneseq
        %v1323 = vshrl.u32 %v1322, 7
        %v1324 = vsub.s32 0, %v1323
        %v1325 = vrot.slane %v1320, %v1324
        %vm1327 = vcmask 261120
        %v1329 = vsel %vm1327, %v798, 0
        %v1332 = vsel %vm1327, %v871, 0
        %v1335 = vsel %vm1327, %v944, 0
        %v1338 = vsel %vm1327, %v1017, 0
        %v1341 = vsel %vm1327, %v1090, 0
        %v1344 = vsel %vm1327, %v1163, 0
        %v1347 = vsel %vm1327, %v1236, 0
        %v1350 = vsel %vm1327, %v1309, 0
        %1352 = vmatprep.subr.mxu0 0.0
        %1353 = vmatpush1.msra.mxu0 %v1312
        %1354 = vmatprep.subr.mxu0 0.0
        %1355 = vmatpush1.msra.mxu0 %v1313
        %1356 = vmatprep.subr.mxu0 0.0
        %1357 = vmatpush1.msra.mxu0 %v1314
        %1358 = vmatprep.subr.mxu0 0.0
        %1359 = vmatpush1.msra.mxu0 %v1315
        %1360 = vmatprep.subr.mxu0 0.0
        %1361 = vmatpush1.msra.mxu0 0.0
        %1362 = vmatprep.subr.mxu0 0.0
        %1363 = vmatpush1.msra.mxu0 0.0
        %1364 = vmatprep.subr.mxu0 0.0
        %1365 = vmatpush1.msra.mxu0 0.0
        %1366 = vmatprep.subr.mxu0 0.0
        %1367 = vmatpush1.msra.mxu0 0.0
        %1368 = vmatprep.subr.mxu0 0.0
        %1369 = vmatpush1.msra.mxu0 0.0
        %1370 = vmatprep.subr.mxu0 0.0
        %1371 = vmatpush1.msra.mxu0 0.0
        %1372 = vmatprep.subr.mxu0 0.0
        %1373 = vmatpush1.msra.mxu0 0.0
        %1374 = vmatprep.subr.mxu0 0.0
        %1375 = vmatpush1.msra.mxu0 0.0
        %1376 = vmatprep.subr.mxu0 0.0
        %1377 = vmatpush1.msra.mxu0 0.0
        %1378 = vmatprep.subr.mxu0 0.0
        %1379 = vmatpush1.msra.mxu0 0.0
        %1380 = vmatprep.subr.mxu0 0.0
        %1381 = vmatpush1.msra.mxu0 0.0
        %1382 = vmatprep.subr.mxu0 0.0
        %1383 = vmatpush1.msra.mxu0 0.0
        %1384 = vmatprep.subr.mxu0 0.0
        %1385 = vmatpush1.msra.mxu0 0.0
        %1386 = vmatprep.subr.mxu0 0.0
        %1387 = vmatpush1.msra.mxu0 0.0
        %1388 = vmatprep.subr.mxu0 0.0
        %1389 = vmatpush1.msra.mxu0 0.0
        %1390 = vmatprep.subr.mxu0 0.0
        %1391 = vmatpush1.msra.mxu0 0.0
        %1392 = vmatprep.subr.mxu0 0.0
        %1393 = vmatpush1.msra.mxu0 0.0
        %1394 = vmatprep.subr.mxu0 0.0
        %1395 = vmatpush1.msra.mxu0 0.0
        %1396 = vmatprep.subr.mxu0 0.0
        %1397 = vmatpush1.msra.mxu0 0.0
        %1398 = vmatprep.subr.mxu0 0.0
        %1399 = vmatpush1.msra.mxu0 0.0
        %1400 = vmatprep.subr.mxu0 0.0
        %1401 = vmatpush1.msra.mxu0 0.0
        %1402 = vmatprep.subr.mxu0 0.0
        %1403 = vmatpush1.msra.mxu0 0.0
        %1404 = vmatprep.subr.mxu0 0.0
        %1405 = vmatpush1.msra.mxu0 0.0
        %1406 = vmatprep.subr.mxu0 0.0
        %1407 = vmatpush1.msra.mxu0 0.0
        %1408 = vmatprep.subr.mxu0 0.0
        %1409 = vmatpush1.msra.mxu0 0.0
        %1410 = vmatprep.subr.mxu0 0.0
        %1411 = vmatpush1.msra.mxu0 0.0
        %1412 = vmatprep.subr.mxu0 0.0
        %1413 = vmatpush1.msra.mxu0 0.0
        %1414 = vmatprep.subr.mxu0 0.0
        %1415 = vmatpush1.msra.mxu0 0.0
        %1416 = vmatprep.mubr.f32.mxu0 0.0
        %1417 = vmatmul.mubr.f32.gmra.mrb[0].mxu0 %v1329
        %v1418 = vpop.f32.mrb[0].mxu0
        %v1419 = vadd.f32 %v1325, %v1418
        %v1420 = vpop.f32.mrb[0].mxu0
        %1421 = vmatprep.mubr.f32.mxu0 0.0
        %1422 = vmatmul.mubr.f32.gmra.mrb[0].mxu0 %v1332
        %v1423 = vpop.f32.mrb[0].mxu0
        %v1424 = vadd.f32 %v1325, %v1423
        %v1425 = vpop.f32.mrb[0].mxu0
        %1426 = vmatprep.mubr.f32.mxu0 0.0
        %1427 = vmatmul.mubr.f32.gmra.mrb[0].mxu0 %v1335
        %v1428 = vpop.f32.mrb[0].mxu0
        %v1429 = vadd.f32 %v1325, %v1428
        %v1430 = vpop.f32.mrb[0].mxu0
        %1431 = vmatprep.mubr.f32.mxu0 0.0
        %1432 = vmatmul.mubr.f32.gmra.mrb[0].mxu0 %v1338
        %v1433 = vpop.f32.mrb[0].mxu0
        %v1434 = vadd.f32 %v1325, %v1433
        %v1435 = vpop.f32.mrb[0].mxu0
        %1436 = vmatprep.mubr.f32.mxu0 0.0
        %1437 = vmatmul.mubr.f32.gmra.mrb[0].mxu0 %v1341
        %v1438 = vpop.f32.mrb[0].mxu0
        %v1439 = vadd.f32 %v1325, %v1438
        %v1440 = vpop.f32.mrb[0].mxu0
        %1441 = vmatprep.mubr.f32.mxu0 0.0
        %1442 = vmatmul.mubr.f32.gmra.mrb[0].mxu0 %v1344
        %v1443 = vpop.f32.mrb[0].mxu0
        %v1444 = vadd.f32 %v1325, %v1443
        %v1445 = vpop.f32.mrb[0].mxu0
        %1446 = vmatprep.mubr.f32.mxu0 0.0
        %1447 = vmatmul.mubr.f32.gmra.mrb[0].mxu0 %v1347
        %v1448 = vpop.f32.mrb[0].mxu0
        %v1449 = vadd.f32 %v1325, %v1448
        %v1450 = vpop.f32.mrb[0].mxu0
        %1451 = vmatprep.mubr.f32.mxu0 0.0
        %1452 = vmatmul.mubr.f32.gmra.mrb[0].mxu0 %v1350
        %v1453 = vpop.f32.mrb[0].mxu0
        %v1454 = vadd.f32 %v1325, %v1453
        %v1455 = vpop.f32.mrb[0].mxu0
        %1456 = vdwg.mxu0
        %v1457 = vmax.f32 %v1419, 0.0
        %v1458 = vmax.f32 %v1424, 0.0
        %v1459 = vmax.f32 %v1429, 0.0
        %v1460 = vmax.f32 %v1434, 0.0
        %v1461 = vmax.f32 %v1439, 0.0
        %v1462 = vmax.f32 %v1444, 0.0
        %v1463 = vmax.f32 %v1449, 0.0
        %v1464 = vmax.f32 %v1454, 0.0
        %v1465 = vld [vmem:[%s7] sm:$0x1]
        %v1467 = vlaneseq
        %v1468 = vshrl.u32 %v1467, 7
        %v1469 = vsub.s32 0, %v1468
        %v1470 = vrot.slane %v1465, %v1469
        %v1473 = vsel %vm1327, %v1457, 0
        %v1476 = vsel %vm1327, %v1458, 0
        %v1479 = vsel %vm1327, %v1459, 0
        %v1482 = vsel %vm1327, %v1460, 0
        %v1485 = vsel %vm1327, %v1461, 0
        %v1488 = vsel %vm1327, %v1462, 0
        %v1491 = vsel %vm1327, %v1463, 0
        %v1494 = vsel %vm1327, %v1464, 0
        %1496 = vmatprep.subr.mxu0 0.0
        %1497 = vmatpush1.msra.mxu0 %v1316
        %1498 = vmatprep.subr.mxu0 0.0
        %1499 = vmatpush1.msra.mxu0 %v1317
        %1500 = vmatprep.subr.mxu0 0.0
        %1501 = vmatpush1.msra.mxu0 %v1318
        %1502 = vmatprep.subr.mxu0 0.0
        %1503 = vmatpush1.msra.mxu0 %v1319
        %1504 = vmatprep.subr.mxu0 0.0
        %1505 = vmatpush1.msra.mxu0 0.0
        %1506 = vmatprep.subr.mxu0 0.0
        %1507 = vmatpush1.msra.mxu0 0.0
        %1508 = vmatprep.subr.mxu0 0.0
        %1509 = vmatpush1.msra.mxu0 0.0
        %1510 = vmatprep.subr.mxu0 0.0
        %1511 = vmatpush1.msra.mxu0 0.0
        %1512 = vmatprep.subr.mxu0 0.0
        %1513 = vmatpush1.msra.mxu0 0.0
        %1514 = vmatprep.subr.mxu0 0.0
        %1515 = vmatpush1.msra.mxu0 0.0
        %1516 = vmatprep.subr.mxu0 0.0
        %1517 = vmatpush1.msra.mxu0 0.0
        %1518 = vmatprep.subr.mxu0 0.0
        %1519 = vmatpush1.msra.mxu0 0.0
        %1520 = vmatprep.subr.mxu0 0.0
        %1521 = vmatpush1.msra.mxu0 0.0
        %1522 = vmatprep.subr.mxu0 0.0
        %1523 = vmatpush1.msra.mxu0 0.0
        %1524 = vmatprep.subr.mxu0 0.0
        %1525 = vmatpush1.msra.mxu0 0.0
        %1526 = vmatprep.subr.mxu0 0.0
        %1527 = vmatpush1.msra.mxu0 0.0
        %1528 = vmatprep.subr.mxu0 0.0
        %1529 = vmatpush1.msra.mxu0 0.0
        %1530 = vmatprep.subr.mxu0 0.0
        %1531 = vmatpush1.msra.mxu0 0.0
        %1532 = vmatprep.subr.mxu0 0.0
        %1533 = vmatpush1.msra.mxu0 0.0
        %1534 = vmatprep.subr.mxu0 0.0
        %1535 = vmatpush1.msra.mxu0 0.0
        %1536 = vmatprep.subr.mxu0 0.0
        %1537 = vmatpush1.msra.mxu0 0.0
        %1538 = vmatprep.subr.mxu0 0.0
        %1539 = vmatpush1.msra.mxu0 0.0
        %1540 = vmatprep.subr.mxu0 0.0
        %1541 = vmatpush1.msra.mxu0 0.0
        %1542 = vmatprep.subr.mxu0 0.0
        %1543 = vmatpush1.msra.mxu0 0.0
        %1544 = vmatprep.subr.mxu0 0.0
        %1545 = vmatpush1.msra.mxu0 0.0
        %1546 = vmatprep.subr.mxu0 0.0
        %1547 = vmatpush1.msra.mxu0 0.0
        %1548 = vmatprep.subr.mxu0 0.0
        %1549 = vmatpush1.msra.mxu0 0.0
        %1550 = vmatprep.subr.mxu0 0.0
        %1551 = vmatpush1.msra.mxu0 0.0
        %1552 = vmatprep.subr.mxu0 0.0
        %1553 = vmatpush1.msra.mxu0 0.0
        %1554 = vmatprep.subr.mxu0 0.0
        %1555 = vmatpush1.msra.mxu0 0.0
        %1556 = vmatprep.subr.mxu0 0.0
        %1557 = vmatpush1.msra.mxu0 0.0
        %1558 = vmatprep.subr.mxu0 0.0
        %1559 = vmatpush1.msra.mxu0 0.0
        %1560 = vmatprep.mubr.f32.mxu0 0.0
        %1561 = vmatmul.mubr.f32.gmra.mrb[0].mxu0 %v1473
        %v1562 = vpop.f32.mrb[0].mxu0
        %v1563 = vadd.f32 %v1470, %v1562
        %v1564 = vpop.f32.mrb[0].mxu0
        %1565 = vmatprep.mubr.f32.mxu0 0.0
        %1566 = vmatmul.mubr.f32.gmra.mrb[0].mxu0 %v1476
        %v1567 = vpop.f32.mrb[0].mxu0
        %v1568 = vadd.f32 %v1470, %v1567
        %v1569 = vpop.f32.mrb[0].mxu0
        %1570 = vmatprep.mubr.f32.mxu0 0.0
        %1571 = vmatmul.mubr.f32.gmra.mrb[0].mxu0 %v1479
        %v1572 = vpop.f32.mrb[0].mxu0
        %v1573 = vadd.f32 %v1470, %v1572
        %v1574 = vpop.f32.mrb[0].mxu0
        %1575 = vmatprep.mubr.f32.mxu0 0.0
        %1576 = vmatmul.mubr.f32.gmra.mrb[0].mxu0 %v1482
        %v1577 = vpop.f32.mrb[0].mxu0
        %v1578 = vadd.f32 %v1470, %v1577
        %v1579 = vpop.f32.mrb[0].mxu0
        %1580 = vmatprep.mubr.f32.mxu0 0.0
        %1581 = vmatmul.mubr.f32.gmra.mrb[0].mxu0 %v1485
        %v1582 = vpop.f32.mrb[0].mxu0
        %v1583 = vadd.f32 %v1470, %v1582
        %v1584 = vpop.f32.mrb[0].mxu0
        %1585 = vmatprep.mubr.f32.mxu0 0.0
        %1586 = vmatmul.mubr.f32.gmra.mrb[0].mxu0 %v1488
        %v1587 = vpop.f32.mrb[0].mxu0
        %v1588 = vadd.f32 %v1470, %v1587
        %v1589 = vpop.f32.mrb[0].mxu0
        %1590 = vmatprep.mubr.f32.mxu0 0.0
        %1591 = vmatmul.mubr.f32.gmra.mrb[0].mxu0 %v1491
        %v1592 = vpop.f32.mrb[0].mxu0
        %v1593 = vadd.f32 %v1470, %v1592
        %v1594 = vpop.f32.mrb[0].mxu0
        %1595 = vmatprep.mubr.f32.mxu0 0.0
        %1596 = vmatmul.mubr.f32.gmra.mrb[0].mxu0 %v1494
        %v1597 = vpop.f32.mrb[0].mxu0
        %v1598 = vadd.f32 %v1470, %v1597
        %v1599 = vpop.f32.mrb[0].mxu0
        %1600 = vdwg.mxu0
        %v1601 = vld [vmem:[#allocation10] sm:$0xff]
        %v1602 = vld [vmem:[#allocation10 + $0x8] sm:$0xff]
        %v1603 = vld [vmem:[#allocation10 + $0x10] sm:$0xff]
        %v1604 = vmul.f32 %v1601, %v426
        %v1605 = vmul.f32 %v1601, %v427
        %v1606 = vmul.f32 %v1601, %v428
        %v1607 = vmul.f32 %v1601, %v429
        %v1608 = vmul.f32 %v1601, %v430
        %v1609 = vmul.f32 %v1601, %v431
        %v1610 = vmul.f32 %v1601, %v432
        %v1611 = vmul.f32 %v1601, %v433
        %v1612 = vmul.f32 %v1602, %v798
        %v1613 = vmul.f32 %v1602, %v871
        %v1614 = vmul.f32 %v1602, %v944
        %v1615 = vmul.f32 %v1602, %v1017
        %v1616 = vmul.f32 %v1602, %v1090
        %v1617 = vmul.f32 %v1602, %v1163
        %v1618 = vmul.f32 %v1602, %v1236
        %v1619 = vmul.f32 %v1602, %v1309
        %v1620 = vadd.f32 %v1604, %v1612
        %v1621 = vadd.f32 %v1605, %v1613
        %v1622 = vadd.f32 %v1606, %v1614
        %v1623 = vadd.f32 %v1607, %v1615
        %v1624 = vadd.f32 %v1608, %v1616
        %v1625 = vadd.f32 %v1609, %v1617
        %v1626 = vadd.f32 %v1610, %v1618
        %v1627 = vadd.f32 %v1611, %v1619
        %v1628 = vmul.f32 %v1603, %v1563
        %v1629 = vmul.f32 %v1603, %v1568
        %v1630 = vmul.f32 %v1603, %v1573
        %v1631 = vmul.f32 %v1603, %v1578
        %v1632 = vmul.f32 %v1603, %v1583
        %v1633 = vmul.f32 %v1603, %v1588
        %v1634 = vmul.f32 %v1603, %v1593
        %v1635 = vmul.f32 %v1603, %v1598
        %v1636 = vadd.f32 %v1620, %v1628
        %v1637 = vadd.f32 %v1621, %v1629
        %v1638 = vadd.f32 %v1622, %v1630
        %v1639 = vadd.f32 %v1623, %v1631
        %v1640 = vadd.f32 %v1624, %v1632
        %v1641 = vadd.f32 %v1625, %v1633
        %v1642 = vadd.f32 %v1626, %v1634
        %v1643 = vadd.f32 %v1627, %v1635
        %1644 = vst.msk [vmem:[%s419] sm:$0xff] %vm1327, %v1636
        %1645 = vst.msk [vmem:[%s419 + $0x8] sm:$0xff] %vm1327, %v1637
        %1646 = vst.msk [vmem:[%s419 + $0x10] sm:$0xff] %vm1327, %v1638
        %1647 = vst.msk [vmem:[%s419 + $0x18] sm:$0xff] %vm1327, %v1639
        %1648 = vst.msk [vmem:[%s419 + $0x20] sm:$0xff] %vm1327, %v1640
        %1649 = vst.msk [vmem:[%s419 + $0x28] sm:$0xff] %vm1327, %v1641
        %1650 = vst.msk [vmem:[%s419 + $0x30] sm:$0xff] %vm1327, %v1642
        %1651 = vst.msk [vmem:[%s419 + $0x38] sm:$0xff] %vm1327, %v1643
        %s1652 = sand.u32 %s236, 1
        %s1653 = scalar_lea.sflag [#allocation4], %s1652
        %s1654 = sand.u32 %s236, 1
        %s1655 = smul.addr %s1654, 64
        %s1656 = scalar_lea.vmem [#allocation12], %s1655
        // Predicated region
        $region77: #{tpu_custom_call.1} parent=55 // pred_check
          %p1657 = pneg %p246
        $region78: #{tpu_custom_call.1} parent=55 // pred_check_branch
          %1659 = sbr.rel (%p1657) target = $region80
        $region79: #{tpu_custom_call.1} parent=55 // pred_region
          %s1660 = smul.u32 8, %s29
          %s1662 = ssub.s32 1024, 1024
          %1663 = vsyncadd %s1653, %s1662
          %s1664 = smul.addr %s1660, 128
          %s1665 = scalar_lea.hbm %s9, %s1664
          %s1666 = sshll.u32 %s1656, 4
          %s1667 = int_to_ptr.vmem [resolvable:$true] %s1666
          %1672 = dma.vmem_to_hbm [thread:$0]  %s1667, 1024, %s1665, %s1653, 128, 128, 8
        $region80: #{tpu_custom_call.1} parent=55 // pred_fallthru
          _
      $region56: #{tpu_custom_call.1} parent=5 // pred_fallthru
        _
      %p1673 = scmp.le.s32.totalorder 2, %s24
      // Predicated region
      $region81: #{tpu_custom_call.1} parent=5 // pred_check
        %p1674 = pneg %p1673
      $region82: #{tpu_custom_call.1} parent=5 // pred_check_branch
        %1676 = sbr.rel (%p1674) target = $region84
      $region83: #{tpu_custom_call.1} parent=5 // pred_region
        %s1677 = ssub.s32 %s24, 2
        // Predicated region
        $region85: #{tpu_custom_call.1} parent=83 // pred_check
          %p1678 = pneg %p252
        $region86: #{tpu_custom_call.1} parent=83 // pred_check_branch
          %1680 = sbr.rel (%p1678) target = $region88
        $region87: #{tpu_custom_call.1} parent=83 // pred_region
          %s1681 = sand.u32 %s237, 1
          %s1682 = scalar_lea.sflag [#allocation4], %s1681
          %s1683 = sand.u32 %s237, 1
          %s1684 = smul.addr %s1683, 64
          %s1685 = scalar_lea.vmem [#allocation12], %s1684
          %1686 = dma.done %s1682, 1024
        $region88: #{tpu_custom_call.1} parent=83 // pred_fallthru
          _
      $region84: #{tpu_custom_call.1} parent=5 // pred_fallthru
        _
    $region6: #{tpu_custom_call.1} parent=1 // loop_footer
      %s28 = sadd.s32 1, %s24
    $region7: #{tpu_custom_call.1} parent=1 // loop_footer_branch
      %23 = sbr.rel target = $region3
    $region8: #{tpu_custom_call.1} parent=1 // loop_exit
      _
    %1687 = vsyncpa [#allocation3], 1
    %s1688 = scalar_lea.sflag [#allocation3], 1
    %1689 = vsyncpa %s1688, 1
    %1690 = vsyncpa [#allocation8], 1
    %1691 = vsyncpa [#allocation11], 1
    %1692 = vsyncpa [#allocation4], 1
    %s1693 = scalar_lea.sflag [#allocation4], 1
    %1694 = vsyncpa %s1693, 1
    %1695 = vsyncpa [#allocation5], 1
    %s1696 = scalar_lea.sflag [#allocation5], 1
    %1697 = vsyncpa %s1696, 1

</llo_original>
